<compile_context>
chip_gen: v5e
topology: v5e:2x2
jax: 0.10.0
libtpu: 0.0.40
codegen_flags: <defaults>
</compile_context>

<pallas_src>
import functools

import jax
import jax.numpy as jnp
from jax.experimental import pallas as pl
from jax.experimental.pallas import tpu as pltpu


def _round_up(n, m):
    return ((n + m - 1) // m) * m


def _num_tensorcores():
    """TensorCores the grid can be sharded across: 2 on v7x, 1 on v5e/v6e."""
    try:
        kind = jax.devices()[0].device_kind.lower()
    except Exception:
        return 1
    return 2 if "v7" in kind else 1


def _grid_net_kernel(x_ref, w_ref, b_ref, mask_ref, dw_ref, db_ref, o_ref, *,
                     n_layers, height, width):
    # x_ref   : (TB, HW)    activations, one image per sublane row (lane-dense)
    # w_ref   : (L, HW)     per-layer grid weights (flattened row-major)
    # b_ref   : (L, HW)     per-layer grid biases
    # mask_ref: (4, HW)     0/1 boundary masks (not-first-col, not-last-col,
    #                       not-first-row, not-last-row)
    # dw_ref  : (HW, Cpad)  dense weight, transposed + zero-padded classes
    # db_ref  : (1, Cpad)   dense bias, zero-padded classes
    # o_ref   : (TB, Cpad)  logits (padded classes)
    hw = height * width
    a = x_ref[...]                         # (TB, HW) f32
    masks = mask_ref[...]                  # (4, HW)  f32 0/1
    not_first_col = masks[0:1, :]          # j > 0
    not_last_col = masks[1:2, :]           # j < W-1
    not_first_row = masks[2:3, :]          # i > 0
    not_last_row = masks[3:4, :]           # i < H-1

    for l in range(n_layers):              # L is small -> static unroll
        wl = w_ref[pl.ds(l, 1), :]         # (1, HW), broadcasts over TB rows
        bl = b_ref[pl.ds(l, 1), :]         # (1, HW)
        p = a * wl                         # elementwise grid weights (VPU)
        # 3-tap sum along the image width: lane rotations + boundary masks.
        left = pltpu.roll(p, shift=1, axis=1) * not_first_col
        right = pltpu.roll(p, shift=hw - 1, axis=1) * not_last_col
        row_sum = left + p + right
        # 3-tap sum along the image height: rotate by a full row of W lanes.
        up = pltpu.roll(row_sum, shift=width, axis=1) * not_first_row
        down = pltpu.roll(row_sum, shift=hw - width, axis=1) * not_last_row
        a = jnp.sin(up + row_sum + down + bl)   # exact zero-padded boxsum

    logits = jnp.dot(a, dw_ref[...], preferred_element_type=jnp.float32)  # MXU
    o_ref[...] = logits + db_ref[...]      # single lane-dense (TB, Cpad) store


@functools.partial(jax.jit, static_argnames=("block_batch",))
def grid_neural_network_3d(x, grid_w, grid_b, dense_w, dense_b, *, block_batch=512):
    """x: (B, 1, H, W) float32 (NCHW, C == 1). Returns logits (B, n_classes)."""
    B, c_in, H, W = x.shape
    assert c_in == 1, "GridLayer semantics require a single input channel"
    L = grid_w.shape[0]
    C = dense_w.shape[0]
    HW = H * W

    # ---- host-side packing (static-shape, fused by XLA around the call) ----
    x_flat = x.reshape(B, HW).astype(jnp.float32)

    # Batch tiling: one big step per TensorCore when the batch allows.  Only
    # v7x has 2 TCs (grid sharded via "parallel"); forcing >=2 steps on
    # v5e/v6e is pure per-step overhead.  TB <= round_up(B, 8) so padded
    # garbage rows stay minimal.
    n_tc = _num_tensorcores()
    n_steps = max(1, -(-B // block_batch), n_tc)
    if n_steps % n_tc:
        n_steps += n_tc - (n_steps % n_tc)        # balanced across cores
    TB = _round_up(-(-B // n_steps), 8)
    Bp = TB * n_steps
    if Bp != B:
        x_flat = jnp.pad(x_flat, ((0, Bp - B), (0, 0)))

    # Per-layer grid params, flattened row-major to match the activations.
    grid_w_f = grid_w.reshape(L, HW).astype(jnp.float32)
    grid_b_f = grid_b.reshape(L, HW).astype(jnp.float32)

    # 0/1 boundary masks for the roll-based 3x3 zero-padded stencil.
    col = jnp.arange(HW, dtype=jnp.int32) % W
    row = jnp.arange(HW, dtype=jnp.int32) // W
    masks = jnp.stack(
        [col > 0, col < W - 1, row > 0, row < H - 1]).astype(jnp.float32)  # (4, HW)

    # Dense head: transpose + pad class dim to a multiple of 128 so the
    # output store is a full, unmasked lane-dense tile; sliced off below.
    Cpad = _round_up(C, 128)
    dw_t = jnp.pad(dense_w.astype(jnp.float32).T, ((0, 0), (0, Cpad - C)))
    db_p = jnp.pad(dense_b.astype(jnp.float32), (0, Cpad - C)).reshape(1, Cpad)

    kernel = functools.partial(_grid_net_kernel, n_layers=L, height=H, width=W)

    cost = pl.CostEstimate(
        flops=Bp * HW * (12 * L + 2 * Cpad),
        transcendentals=L * Bp * HW,
        bytes_accessed=4 * (Bp * HW + Bp * Cpad + 2 * L * HW + 4 * HW
                            + HW * Cpad + Cpad),
    )

    out = pl.pallas_call(
        kernel,
        out_shape=jax.ShapeDtypeStruct((Bp, Cpad), jnp.float32),
        grid_spec=pltpu.PrefetchScalarGridSpec(
            num_scalar_prefetch=0,
            grid=(n_steps,),
            in_specs=[
                pl.BlockSpec((TB, HW), lambda s: (s, 0)),    # activations (per step)
                pl.BlockSpec((L, HW), lambda s: (0, 0)),     # grid weights (resident)
                pl.BlockSpec((L, HW), lambda s: (0, 0)),     # grid biases  (resident)
                pl.BlockSpec((4, HW), lambda s: (0, 0)),     # boundary masks (resident)
                pl.BlockSpec((HW, Cpad), lambda s: (0, 0)),  # dense weight (resident)
                pl.BlockSpec((1, Cpad), lambda s: (0, 0)),   # dense bias   (resident)
            ],
            out_specs=pl.BlockSpec((TB, Cpad), lambda s: (s, 0)),
        ),
        compiler_params=pltpu.CompilerParams(
            dimension_semantics=("parallel",),
        ),
        cost_estimate=cost,
    )(x_flat, grid_w_f, grid_b_f, masks, dw_t, db_p)

    return out[:B, :C]


def _reference(x, grid_w, grid_b, dense_w, dense_b):
    """Pure-JAX reference (unfold semantics via explicit zero-padded box sum)."""
    xb = x[:, 0]  # (B, H, W)
    B, H, W = xb.shape
    for l in range(grid_w.shape[0]):
        p = xb * grid_w[l][None]
        pp = jnp.pad(p, ((0, 0), (1, 1), (1, 1)))
        s = sum(pp[:, di:di + H, dj:dj + W] for di in range(3) for dj in range(3))
        xb = jnp.sin(s + grid_b[l][None])
    flat = xb.reshape(B, -1)
    return flat @ dense_w.T + dense_b


if __name__ == "__main__":
    # cfg: image_height = image_width = 16, n_classes = 10, n_layers = 3
    H = W = 16
    n_classes = 10
    n_layers = 3
    B = 16   # small demo batch; TB logic scales to large B automatically

    key = jax.random.PRNGKey(0)
    kx, kw, kb, kdw, kdb = jax.random.split(key, 5)

    # xavier_init(fan_in=9, fan_out=9) -> uniform(+-sqrt(6/18)), deterministic here.
    limit = (6.0 / (9 + 9)) ** 0.5
    grid_w = jax.random.uniform(kw, (n_layers, H, W), jnp.float32, -limit, limit)
    # Torch inits bias to zeros; use small random biases to exercise the path.
    grid_b = 0.1 * jax.random.normal(kb, (n_layers, H, W), jnp.float32)

    # nn.Linear(H*W, n_classes) default-style init, deterministic.
    dlim = 1.0 / (H * W) ** 0.5
    dense_w = jax.random.uniform(kdw, (n_classes, H * W), jnp.float32, -dlim, dlim)
    dense_b = jax.random.uniform(kdb, (n_classes,), jnp.float32, -dlim, dlim)

    x = jax.random.normal(kx, (B, 1, H, W), jnp.float32)

    out = grid_neural_network_3d(x, grid_w, grid_b, dense_w, dense_b)
    out = jax.block_until_ready(out)

    ref = _reference(x, grid_w, grid_b, dense_w, dense_b)
    assert out.shape == (B, n_classes)
    assert jnp.allclose(out, ref, atol=1e-3, rtol=1e-3), (out, ref)

    print("KERNEL_OK")
</pallas_src>

<mosaic_0001>
module attributes {stable_mosaic.version = 11 : i64} {
  func.func @_grid_net_kernel(%arg0: i32, %arg1: memref<16x256xf32, #tpu.memory_space<vmem>>, %arg2: memref<3x256xf32, #tpu.memory_space<vmem>>, %arg3: memref<3x256xf32, #tpu.memory_space<vmem>>, %arg4: memref<4x256xf32, #tpu.memory_space<vmem>>, %arg5: memref<256x128xf32, #tpu.memory_space<vmem>>, %arg6: memref<1x128xf32, #tpu.memory_space<vmem>>, %arg7: memref<16x128xf32, #tpu.memory_space<vmem>>) attributes {dimension_semantics = [#tpu.dimension_semantics<parallel>], iteration_bounds = array<i64: 1>, scalar_prefetch = 0 : i64, scratch_operands = 0 : i64, tpu.core_type = #tpu.core_type<tc>, window_params = [{transform_indices = @transform_0, window_bounds = array<i64: 16, 256>}, {pipeline_mode = #tpu.pipeline_mode<synchronous>, transform_indices = @transform_1, window_bounds = array<i64: 3, 256>}, {pipeline_mode = #tpu.pipeline_mode<synchronous>, transform_indices = @transform_2, window_bounds = array<i64: 3, 256>}, {pipeline_mode = #tpu.pipeline_mode<synchronous>, transform_indices = @transform_3, window_bounds = array<i64: 4, 256>}, {pipeline_mode = #tpu.pipeline_mode<synchronous>, transform_indices = @transform_4, window_bounds = array<i64: 256, 128>}, {pipeline_mode = #tpu.pipeline_mode<synchronous>, transform_indices = @transform_5, window_bounds = array<i64: 1, 128>}, {transform_indices = @transform_6, window_bounds = array<i64: 16, 128>}]} {
    %c0 = arith.constant 0 : index
    %c0_0 = arith.constant 0 : index
    %0 = vector.load %arg1[%c0, %c0_0] : memref<16x256xf32, #tpu.memory_space<vmem>>, vector<16x256xf32>
    %c0_1 = arith.constant 0 : index
    %c0_2 = arith.constant 0 : index
    %1 = vector.load %arg4[%c0_1, %c0_2] : memref<4x256xf32, #tpu.memory_space<vmem>>, vector<4x256xf32>
    %2 = vector.extract_strided_slice %1 {offsets = [0, 0], sizes = [1, 256], strides = [1, 1]} : vector<4x256xf32> to vector<1x256xf32>
    %3 = vector.extract_strided_slice %1 {offsets = [1, 0], sizes = [1, 256], strides = [1, 1]} : vector<4x256xf32> to vector<1x256xf32>
    %4 = vector.extract_strided_slice %1 {offsets = [2, 0], sizes = [1, 256], strides = [1, 1]} : vector<4x256xf32> to vector<1x256xf32>
    %5 = vector.extract_strided_slice %1 {offsets = [3, 0], sizes = [1, 256], strides = [1, 1]} : vector<4x256xf32> to vector<1x256xf32>
    %c0_3 = arith.constant 0 : index
    %c0_4 = arith.constant 0 : index
    %6 = vector.load %arg2[%c0_3, %c0_4] : memref<3x256xf32, #tpu.memory_space<vmem>>, vector<1x256xf32>
    %c0_5 = arith.constant 0 : index
    %c0_6 = arith.constant 0 : index
    %7 = vector.load %arg3[%c0_5, %c0_6] : memref<3x256xf32, #tpu.memory_space<vmem>>, vector<1x256xf32>
    %8 = vector.broadcast %6 : vector<1x256xf32> to vector<16x256xf32>
    %9 = arith.mulf %0, %8 : vector<16x256xf32>
    %c1_i32 = arith.constant 1 : i32
    %10 = tpu.dynamic_rotate %9 by %c1_i32 dim 1 : vector<16x256xf32>, i32 -> vector<16x256xf32>
    %11 = vector.broadcast %2 : vector<1x256xf32> to vector<16x256xf32>
    %12 = arith.mulf %10, %11 : vector<16x256xf32>
    %c255_i32 = arith.constant 255 : i32
    %13 = tpu.dynamic_rotate %9 by %c255_i32 dim 1 : vector<16x256xf32>, i32 -> vector<16x256xf32>
    %14 = vector.broadcast %3 : vector<1x256xf32> to vector<16x256xf32>
    %15 = arith.mulf %13, %14 : vector<16x256xf32>
    %16 = arith.addf %12, %9 : vector<16x256xf32>
    %17 = arith.addf %16, %15 : vector<16x256xf32>
    %c16_i32 = arith.constant 16 : i32
    %18 = tpu.dynamic_rotate %17 by %c16_i32 dim 1 : vector<16x256xf32>, i32 -> vector<16x256xf32>
    %19 = vector.broadcast %4 : vector<1x256xf32> to vector<16x256xf32>
    %20 = arith.mulf %18, %19 : vector<16x256xf32>
    %c240_i32 = arith.constant 240 : i32
    %21 = tpu.dynamic_rotate %17 by %c240_i32 dim 1 : vector<16x256xf32>, i32 -> vector<16x256xf32>
    %22 = vector.broadcast %5 : vector<1x256xf32> to vector<16x256xf32>
    %23 = arith.mulf %21, %22 : vector<16x256xf32>
    %24 = arith.addf %20, %17 : vector<16x256xf32>
    %25 = arith.addf %24, %23 : vector<16x256xf32>
    %26 = vector.broadcast %7 : vector<1x256xf32> to vector<16x256xf32>
    %27 = arith.addf %25, %26 : vector<16x256xf32>
    %28 = math.sin %27 : vector<16x256xf32>
    %c1 = arith.constant 1 : index
    %c0_7 = arith.constant 0 : index
    %29 = vector.load %arg2[%c1, %c0_7] : memref<3x256xf32, #tpu.memory_space<vmem>>, vector<1x256xf32>
    %c1_8 = arith.constant 1 : index
    %c0_9 = arith.constant 0 : index
    %30 = vector.load %arg3[%c1_8, %c0_9] : memref<3x256xf32, #tpu.memory_space<vmem>>, vector<1x256xf32>
    %31 = vector.broadcast %29 : vector<1x256xf32> to vector<16x256xf32>
    %32 = arith.mulf %28, %31 : vector<16x256xf32>
    %c1_i32_10 = arith.constant 1 : i32
    %33 = tpu.dynamic_rotate %32 by %c1_i32_10 dim 1 : vector<16x256xf32>, i32 -> vector<16x256xf32>
    %34 = vector.broadcast %2 : vector<1x256xf32> to vector<16x256xf32>
    %35 = arith.mulf %33, %34 : vector<16x256xf32>
    %c255_i32_11 = arith.constant 255 : i32
    %36 = tpu.dynamic_rotate %32 by %c255_i32_11 dim 1 : vector<16x256xf32>, i32 -> vector<16x256xf32>
    %37 = vector.broadcast %3 : vector<1x256xf32> to vector<16x256xf32>
    %38 = arith.mulf %36, %37 : vector<16x256xf32>
    %39 = arith.addf %35, %32 : vector<16x256xf32>
    %40 = arith.addf %39, %38 : vector<16x256xf32>
    %c16_i32_12 = arith.constant 16 : i32
    %41 = tpu.dynamic_rotate %40 by %c16_i32_12 dim 1 : vector<16x256xf32>, i32 -> vector<16x256xf32>
    %42 = vector.broadcast %4 : vector<1x256xf32> to vector<16x256xf32>
    %43 = arith.mulf %41, %42 : vector<16x256xf32>
    %c240_i32_13 = arith.constant 240 : i32
    %44 = tpu.dynamic_rotate %40 by %c240_i32_13 dim 1 : vector<16x256xf32>, i32 -> vector<16x256xf32>
    %45 = vector.broadcast %5 : vector<1x256xf32> to vector<16x256xf32>
    %46 = arith.mulf %44, %45 : vector<16x256xf32>
    %47 = arith.addf %43, %40 : vector<16x256xf32>
    %48 = arith.addf %47, %46 : vector<16x256xf32>
    %49 = vector.broadcast %30 : vector<1x256xf32> to vector<16x256xf32>
    %50 = arith.addf %48, %49 : vector<16x256xf32>
    %51 = math.sin %50 : vector<16x256xf32>
    %c2 = arith.constant 2 : index
    %c0_14 = arith.constant 0 : index
    %52 = vector.load %arg2[%c2, %c0_14] : memref<3x256xf32, #tpu.memory_space<vmem>>, vector<1x256xf32>
    %c2_15 = arith.constant 2 : index
    %c0_16 = arith.constant 0 : index
    %53 = vector.load %arg3[%c2_15, %c0_16] : memref<3x256xf32, #tpu.memory_space<vmem>>, vector<1x256xf32>
    %54 = vector.broadcast %52 : vector<1x256xf32> to vector<16x256xf32>
    %55 = arith.mulf %51, %54 : vector<16x256xf32>
    %c1_i32_17 = arith.constant 1 : i32
    %56 = tpu.dynamic_rotate %55 by %c1_i32_17 dim 1 : vector<16x256xf32>, i32 -> vector<16x256xf32>
    %57 = vector.broadcast %2 : vector<1x256xf32> to vector<16x256xf32>
    %58 = arith.mulf %56, %57 : vector<16x256xf32>
    %c255_i32_18 = arith.constant 255 : i32
    %59 = tpu.dynamic_rotate %55 by %c255_i32_18 dim 1 : vector<16x256xf32>, i32 -> vector<16x256xf32>
    %60 = vector.broadcast %3 : vector<1x256xf32> to vector<16x256xf32>
    %61 = arith.mulf %59, %60 : vector<16x256xf32>
    %62 = arith.addf %58, %55 : vector<16x256xf32>
    %63 = arith.addf %62, %61 : vector<16x256xf32>
    %c16_i32_19 = arith.constant 16 : i32
    %64 = tpu.dynamic_rotate %63 by %c16_i32_19 dim 1 : vector<16x256xf32>, i32 -> vector<16x256xf32>
    %65 = vector.broadcast %4 : vector<1x256xf32> to vector<16x256xf32>
    %66 = arith.mulf %64, %65 : vector<16x256xf32>
    %c240_i32_20 = arith.constant 240 : i32
    %67 = tpu.dynamic_rotate %63 by %c240_i32_20 dim 1 : vector<16x256xf32>, i32 -> vector<16x256xf32>
    %68 = vector.broadcast %5 : vector<1x256xf32> to vector<16x256xf32>
    %69 = arith.mulf %67, %68 : vector<16x256xf32>
    %70 = arith.addf %66, %63 : vector<16x256xf32>
    %71 = arith.addf %70, %69 : vector<16x256xf32>
    %72 = vector.broadcast %53 : vector<1x256xf32> to vector<16x256xf32>
    %73 = arith.addf %71, %72 : vector<16x256xf32>
    %74 = math.sin %73 : vector<16x256xf32>
    %c0_21 = arith.constant 0 : index
    %c0_22 = arith.constant 0 : index
    %75 = vector.load %arg5[%c0_21, %c0_22] : memref<256x128xf32, #tpu.memory_space<vmem>>, vector<256x128xf32>
    %cst = arith.constant dense<0.000000e+00> : vector<16x128xf32>
    %76 = tpu.matmul %74, %75, %cst {dimension_numbers = #tpu.dot_dimension_numbers<[1], [0], [0], [1], [0, 0, 1, 1], [], []>} : vector<16x256xf32>, vector<256x128xf32>, vector<16x128xf32> -> vector<16x128xf32>
    %c0_23 = arith.constant 0 : index
    %c0_24 = arith.constant 0 : index
    %77 = vector.load %arg6[%c0_23, %c0_24] : memref<1x128xf32, #tpu.memory_space<vmem>>, vector<1x128xf32>
    %78 = vector.broadcast %77 : vector<1x128xf32> to vector<16x128xf32>
    %79 = arith.addf %76, %78 : vector<16x128xf32>
    %c0_25 = arith.constant 0 : index
    %c0_26 = arith.constant 0 : index
    %80 = vector.load %arg7[%c0_25, %c0_26] : memref<16x128xf32, #tpu.memory_space<vmem>>, vector<16x128xf32>
    tpu.vector_store %arg7[%c0_25, %c0_26], %79 {strides = array<i32>} : memref<16x128xf32, #tpu.memory_space<vmem>>, vector<16x128xf32>,
    return
  }
  func.func @transform_0(%arg0: i32) -> (i32, i32) {
    %c0_i32 = arith.constant 0 : i32
    %c0_i32_0 = arith.constant 0 : i32
    return %arg0, %c0_i32 : i32, i32
  }
  func.func @transform_1(%arg0: i32) -> (i32, i32) {
    %c0_i32 = arith.constant 0 : i32
    %c0_i32_0 = arith.constant 0 : i32
    %c0_i32_1 = arith.constant 0 : i32
    return %c0_i32, %c0_i32_0 : i32, i32
  }
  func.func @transform_2(%arg0: i32) -> (i32, i32) {
    %c0_i32 = arith.constant 0 : i32
    %c0_i32_0 = arith.constant 0 : i32
    %c0_i32_1 = arith.constant 0 : i32
    return %c0_i32, %c0_i32_0 : i32, i32
  }
  func.func @transform_3(%arg0: i32) -> (i32, i32) {
    %c0_i32 = arith.constant 0 : i32
    %c0_i32_0 = arith.constant 0 : i32
    %c0_i32_1 = arith.constant 0 : i32
    return %c0_i32, %c0_i32_0 : i32, i32
  }
  func.func @transform_4(%arg0: i32) -> (i32, i32) {
    %c0_i32 = arith.constant 0 : i32
    %c0_i32_0 = arith.constant 0 : i32
    %c0_i32_1 = arith.constant 0 : i32
    return %c0_i32, %c0_i32_0 : i32, i32
  }
  func.func @transform_5(%arg0: i32) -> (i32, i32) {
    %c0_i32 = arith.constant 0 : i32
    %c0_i32_0 = arith.constant 0 : i32
    %c0_i32_1 = arith.constant 0 : i32
    return %c0_i32, %c0_i32_0 : i32, i32
  }
  func.func @transform_6(%arg0: i32) -> (i32, i32) {
    %c0_i32 = arith.constant 0 : i32
    %c0_i32_0 = arith.constant 0 : i32
    return %arg0, %c0_i32 : i32, i32
  }
}

</mosaic_0001>

<llo_original>
// kernel: grid_neural_network_3d.1
$region0: #{grid_neural_network_3d.1}
  #allocation0 [shape = 'u32[]', space=smem, size = 0x4, offset = 0x4, fixed_abs, tag = 'smem constant byte address 0x4 - core index']
  #allocation1 [shape = 'u32[72,128]{1,0:T(1,128)}', space=vmem, size = 0x9000, scoped, tag = 'internal scratch']
  %s0 = inlined_call_operand.vmem [shape: f32[16,256], index: 0, kind: input, shape index: {}]
  %s1 = inlined_call_operand.vmem [shape: f32[3,256], index: 1, kind: input, shape index: {}]
  %s2 = inlined_call_operand.vmem [shape: f32[3,256], index: 2, kind: input, shape index: {}]
  %s3 = inlined_call_operand.vmem [shape: f32[4,256], index: 3, kind: input, shape index: {}]
  %s4 = inlined_call_operand.vmem [shape: f32[256,128], index: 4, kind: input, shape index: {}]
  %s5 = inlined_call_operand.vmem [shape: f32[1,128], index: 5, kind: input, shape index: {}]
  %s6 = inlined_call_operand.hbm [shape: f32[16,128], index: 6, kind: output, shape index: {}]
  %s7 = sld [smem:[#allocation0]]
  $region34: #{grid_neural_network_3d.1} parent=0
    _
  %s9 = ssub.s32 1, %s7
  %s10 = scalar_select 0, %s9, %s7
  $region1: #{grid_neural_network_3d.1} parent=0
    #allocation2 [shape = 'u8[8192]{0}', space=vmem, size = 0x2000, scoped, tag = 'output window, operand 0, single buffered']
    #allocation3 [shape = 's32[1]{0}', space=sflag, size = 0x4, scoped, tag = 'scoped memory for grid_neural_network_3d.1']
    %11 = vsyncpa [#allocation3], 0
    // Predicated region
    $region2: #{grid_neural_network_3d.1} parent=1 // pred_check
      _
    $region3: #{grid_neural_network_3d.1} parent=1 // pred_check_branch
      %13 = sbr.rel (0) target = $region5
    $region4: #{grid_neural_network_3d.1} parent=1 // pred_region
      _
    $region5: #{grid_neural_network_3d.1} parent=1 // pred_fallthru
      _
    // Predicated region
    $region6: #{grid_neural_network_3d.1} parent=1 // pred_check
      _
    $region7: #{grid_neural_network_3d.1} parent=1 // pred_check_branch
      %15 = sbr.rel (0) target = $region9
    $region8: #{grid_neural_network_3d.1} parent=1 // pred_region
      _
    $region9: #{grid_neural_network_3d.1} parent=1 // pred_fallthru
      _
    // Predicated region
    $region10: #{grid_neural_network_3d.1} parent=1 // pred_check
      _
    $region11: #{grid_neural_network_3d.1} parent=1 // pred_check_branch
      %17 = sbr.rel (0) target = $region13
    $region12: #{grid_neural_network_3d.1} parent=1 // pred_region
      _
    $region13: #{grid_neural_network_3d.1} parent=1 // pred_fallthru
      _
    // Predicated region
    $region14: #{grid_neural_network_3d.1} parent=1 // pred_check
      _
    $region15: #{grid_neural_network_3d.1} parent=1 // pred_check_branch
      %19 = sbr.rel (0) target = $region17
    $region16: #{grid_neural_network_3d.1} parent=1 // pred_region
      _
    $region17: #{grid_neural_network_3d.1} parent=1 // pred_fallthru
      _
    // Predicated region
    $region18: #{grid_neural_network_3d.1} parent=1 // pred_check
      _
    $region19: #{grid_neural_network_3d.1} parent=1 // pred_check_branch
      %21 = sbr.rel (0) target = $region21
    $region20: #{grid_neural_network_3d.1} parent=1 // pred_region
      _
    $region21: #{grid_neural_network_3d.1} parent=1 // pred_fallthru
      _
    // Predicated region
    $region22: #{grid_neural_network_3d.1} parent=1 // pred_check
      _
    $region23: #{grid_neural_network_3d.1} parent=1 // pred_check_branch
      %23 = sbr.rel (0) target = $region25
    $region24: #{grid_neural_network_3d.1} parent=1 // pred_region
      _
    $region25: #{grid_neural_network_3d.1} parent=1 // pred_fallthru
      _
    %v24 = vld [vmem:[%s0] sm:$0xff]
    %v25 = vld [vmem:[%s0 + $0x8] sm:$0xff]
    %v26 = vld [vmem:[%s0 + $0x10] sm:$0xff]
    %v27 = vld [vmem:[%s0 + $0x18] sm:$0xff]
    %v28 = vld [vmem:[%s3] sm:$0xff]
    %v29 = vld [vmem:[%s1] ss:$4 sm:$0x3]
    %v30 = vld [vmem:[%s2] ss:$4 sm:$0x3]
    %v32 = vperm.slane %v29, 0
    %v33 = vperm.slane %v29, 1
    %v36 = vmul.f32 %v24, %v32
    %v37 = vmul.f32 %v25, %v33
    %v38 = vmul.f32 %v26, %v32
    %v39 = vmul.f32 %v27, %v33
    %40 = vrot.lane.b32.xlu0 %v36, 1
    %v41 = vpop.permute.xlu0 %40
    %42 = vrot.lane.b32.xlu0 %v38, 1
    %v43 = vpop.permute.xlu0 %42
    %44 = vrot.lane.b32.xlu0 %v37, 1
    %v45 = vpop.permute.xlu0 %44
    %46 = vrot.lane.b32.xlu0 %v39, 1
    %v47 = vpop.permute.xlu0 %46
    %v48 = vlaneseq
    %v49 = vand.u32 %v48, 127
    %vm50 = vcmp.lt.s32.totalorder %v49, 1
    %v51 = vsel %vm50, %v41, %v45
    %v52 = vsel %vm50, %v43, %v47
    %v53 = vsel %vm50, %v45, %v41
    %v54 = vsel %vm50, %v47, %v43
    %v56 = vperm.slane %v28, 0
    %v57 = vperm.slane %v28, 4
    %v60 = vperm.slane %v56, 0
    %v61 = vperm.slane %v57, 0
    %v62 = vmul.f32 %v53, %v60
    %v63 = vmul.f32 %v51, %v61
    %v64 = vmul.f32 %v54, %v60
    %v65 = vmul.f32 %v52, %v61
    %66 = vrot.lane.b32.xlu0 %v36, 127
    %v67 = vpop.permute.xlu0 %66
    %68 = vrot.lane.b32.xlu0 %v38, 127
    %v69 = vpop.permute.xlu0 %68
    %70 = vrot.lane.b32.xlu0 %v37, 127
    %v71 = vpop.permute.xlu0 %70
    %72 = vrot.lane.b32.xlu0 %v39, 127
    %v73 = vpop.permute.xlu0 %72
    %vm74 = vcmp.lt.s32.totalorder %v49, 127
    %v75 = vsel %vm74, %v67, %v71
    %v76 = vsel %vm74, %v69, %v73
    %v77 = vsel %vm74, %v71, %v67
    %v78 = vsel %vm74, %v73, %v69
    %v79 = vperm.slane %v28, 1
    %v80 = vperm.slane %v28, 5
    %v83 = vperm.slane %v79, 1
    %v84 = vperm.slane %v80, 1
    %v85 = vmul.f32 %v75, %v83
    %v86 = vmul.f32 %v77, %v84
    %v87 = vmul.f32 %v76, %v83
    %v88 = vmul.f32 %v78, %v84
    %v89 = vadd.f32 %v62, %v36
    %v90 = vadd.f32 %v63, %v37
    %v91 = vadd.f32 %v64, %v38
    %v92 = vadd.f32 %v65, %v39
    %v93 = vadd.f32 %v89, %v85
    %v94 = vadd.f32 %v90, %v86
    %v95 = vadd.f32 %v91, %v87
    %v96 = vadd.f32 %v92, %v88
    %97 = vrot.lane.b32.xlu0 %v93, 16
    %v98 = vpop.permute.xlu0 %97
    %99 = vrot.lane.b32.xlu0 %v95, 16
    %v100 = vpop.permute.xlu0 %99
    %101 = vrot.lane.b32.xlu0 %v94, 16
    %v102 = vpop.permute.xlu0 %101
    %103 = vrot.lane.b32.xlu0 %v96, 16
    %v104 = vpop.permute.xlu0 %103
    %vm105 = vcmp.lt.s32.totalorder %v49, 16
    %v106 = vsel %vm105, %v98, %v102
    %v107 = vsel %vm105, %v100, %v104
    %v108 = vsel %vm105, %v102, %v98
    %v109 = vsel %vm105, %v104, %v100
    %v110 = vperm.slane %v28, 2
    %v111 = vperm.slane %v28, 6
    %v114 = vperm.slane %v110, 2
    %v115 = vperm.slane %v111, 2
    %v116 = vmul.f32 %v108, %v114
    %v117 = vmul.f32 %v106, %v115
    %v118 = vmul.f32 %v109, %v114
    %v119 = vmul.f32 %v107, %v115
    %120 = vrot.lane.b32.xlu0 %v93, 112
    %v121 = vpop.permute.xlu0 %120
    %122 = vrot.lane.b32.xlu0 %v95, 112
    %v123 = vpop.permute.xlu0 %122
    %124 = vrot.lane.b32.xlu0 %v94, 112
    %v125 = vpop.permute.xlu0 %124
    %126 = vrot.lane.b32.xlu0 %v96, 112
    %v127 = vpop.permute.xlu0 %126
    %vm128 = vcmp.lt.s32.totalorder %v49, 112
    %v129 = vsel %vm128, %v121, %v125
    %v130 = vsel %vm128, %v123, %v127
    %v131 = vsel %vm128, %v125, %v121
    %v132 = vsel %vm128, %v127, %v123
    %v133 = vperm.slane %v28, 3
    %v134 = vperm.slane %v28, 7
    %v137 = vperm.slane %v133, 3
    %v138 = vperm.slane %v134, 3
    %v139 = vmul.f32 %v129, %v137
    %v140 = vmul.f32 %v131, %v138
    %v141 = vmul.f32 %v130, %v137
    %v142 = vmul.f32 %v132, %v138
    %v143 = vadd.f32 %v116, %v93
    %v144 = vadd.f32 %v117, %v94
    %v145 = vadd.f32 %v118, %v95
    %v146 = vadd.f32 %v119, %v96
    %v147 = vadd.f32 %v143, %v139
    %v148 = vadd.f32 %v144, %v140
    %v149 = vadd.f32 %v145, %v141
    %v150 = vadd.f32 %v146, %v142
    %v152 = vperm.slane %v30, 0
    %v153 = vperm.slane %v30, 1
    %v156 = vadd.f32 %v147, %v152
    %v157 = vadd.f32 %v148, %v153
    %v158 = vadd.f32 %v149, %v152
    %v159 = vadd.f32 %v150, %v153
    %v160 = vand.u32 2147483647, %v156
    %vm161 = vcmp.le.f32.partialorder %v160, 0.7853982
    %vm162 = vcmp.lt.s32.totalorder %v156, 0
    %v163 = vand.u32 %v156, 2139095040
    %v164 = vshrl.u32 %v163, 23
    %v165 = vsub.s32 %v164, 127
    %v166 = vand.u32 2147483647, %v156
    %v167 = vand.u32 %v166, 8388607
    %v168 = vor.u32 %v167, 8388608
    %v169 = vsub.s32 0, %v168
    %v170 = vadd.s32 %v165, 1
    %vm171 = vcmp.gt.s32.totalorder %v170, 0
    %v172 = vsel %vm171, %v170, 0
    %v173 = vshrl.u32 %v172, 5
    %v174 = vand.u32 %v172, 31
    %v175 = vsub.s32 32, %v174
    %v176 = vshrl.u32 683565275, %v175
    %v177 = vshll.u32 683565275, %v174
    %v178 = vshrl.u32 2475754826, %v175
    %v179 = vor.u32 %v177, %v178
    %v180 = vshll.u32 2475754826, %v174
    %v181 = vshrl.u32 2131351028, %v175
    %v182 = vor.u32 %v180, %v181
    %v183 = vshll.u32 2131351028, %v174
    %v184 = vshrl.u32 2102212464, %v175
    %v185 = vor.u32 %v183, %v184
    %v186 = vshll.u32 2102212464, %v174
    %v187 = vshrl.u32 920167782, %v175
    %v188 = vor.u32 %v186, %v187
    %v189 = vshll.u32 920167782, %v174
    %v190 = vshrl.u32 1326507024, %v175
    %v191 = vor.u32 %v189, %v190
    %vm192 = vcmp.lt.s32.totalorder %v173, 1
    %vm193 = vcmp.lt.s32.totalorder %v173, 2
    %vm194 = vcmp.lt.s32.totalorder %v173, 3
    %vm195 = vcmp.lt.s32.totalorder %v173, 4
    %v196 = vsel %vm192, %v176, %v179
    %v197 = vsel %vm195, %v185, 2102212464
    %v198 = vsel %vm194, %v182, %v197
    %v199 = vsel %vm193, %v196, %v198
    %v200 = vsel %vm192, %v179, %v182
    %v201 = vsel %vm195, %v188, 920167782
    %v202 = vsel %vm194, %v185, %v201
    %v203 = vsel %vm193, %v200, %v202
    %v204 = vsel %vm192, %v182, %v185
    %v205 = vsel %vm195, %v191, 1326507024
    %v206 = vsel %vm194, %v188, %v205
    %v207 = vsel %vm193, %v204, %v206
    %v208 = vshll.u32 %v168, 8
    %v209 = vand.u32 %v208, 65535
    %v210 = vshrl.u32 %v208, 16
    %v211 = vand.u32 %v207, 65535
    %v212 = vshrl.u32 %v207, 16
    %v213 = vmul.u32 %v209, %v211
    %v214 = vmul.u32 %v209, %v212
    %v215 = vmul.u32 %v210, %v211
    %v216 = vmul.u32 %v210, %v212
    %v217 = vshll.u32 %v214, 16
    %v218 = vshrl.u32 %v214, 16
    %v219 = vshll.u32 %v215, 16
    %v220 = vshrl.u32 %v215, 16
    %vm221 = vc.u32 %v213, %v217
    %v222 = vsel %vm221, 1, 0
    %v223 = vadd.s32 %v213, %v217
    %v224 = vadd.s32 %v216, %v222
    %vm225 = vc.u32 %v223, %v219
    %v226 = vsel %vm225, 1, 0
    %v227 = vadd.s32 %v223, %v219
    %v228 = vadd.s32 %v224, %v226
    %v229 = vadd.s32 %v228, %v218
    %v230 = vadd.s32 %v229, %v220
    %v231 = vand.u32 %v208, 65535
    %v232 = vshrl.u32 %v208, 16
    %v233 = vand.u32 %v203, 65535
    %v234 = vshrl.u32 %v203, 16
    %v235 = vmul.u32 %v231, %v233
    %v236 = vmul.u32 %v231, %v234
    %v237 = vmul.u32 %v232, %v233
    %v238 = vmul.u32 %v232, %v234
    %v239 = vshll.u32 %v236, 16
    %v240 = vshrl.u32 %v236, 16
    %v241 = vshll.u32 %v237, 16
    %v242 = vshrl.u32 %v237, 16
    %vm243 = vc.u32 %v235, %v239
    %v244 = vsel %vm243, 1, 0
    %v245 = vadd.s32 %v235, %v239
    %v246 = vadd.s32 %v238, %v244
    %vm247 = vc.u32 %v245, %v241
    %v248 = vsel %vm247, 1, 0
    %v249 = vadd.s32 %v245, %v241
    %v250 = vadd.s32 %v246, %v248
    %v251 = vadd.s32 %v250, %v240
    %v252 = vadd.s32 %v251, %v242
    %v253 = vmul.u32 %v208, %v199
    %v254 = vadd.s32 %v230, %v249
    %vm255 = vc.u32 %v230, %v249
    %v256 = vadd.s32 %v252, 1
    %v257 = vsel %vm255, %v256, %v252
    %v258 = vadd.s32 %v253, %v257
    %v259 = vadd.s32 %v258, 536870912
    %v260 = vshrl.u32 %v259, 30
    %v261 = vshll.u32 %v260, 30
    %v262 = vsub.s32 %v258, %v261
    %vm263 = vcmp.lt.s32.totalorder %v262, 0
    %v264 = vsub.s32 0, %v262
    %v265 = vsel %vm263, %v264, %v262
    %v266 = vclz %v265
    %v267 = vsub.s32 %v266, 2
    %vm268 = vcmp.gt.s32.totalorder 0, %v267
    %v269 = vsel %vm268, 0, %v267
    %v270 = vsub.s32 32, %v269
    %v271 = vshll.u32 %v262, %v269
    %v272 = vshrl.u32 %v254, %v270
    %v273 = vor.u32 %v271, %v272
    %v274 = vsub.s32 4294967266, %v269
    %v275 = vadd.s32 %v274, 127
    %v276 = vshll.u32 %v275, 23
    %v277 = vor.u32 4788187, %v276
    %v278 = vand.u32 2147483647, %v277
    %v280 = vcvt.s32.f32 %v273
    %v281 = vmul.f32 %v280, %v278
    %v282 = vxor.u32 %v281, 2147483648
    %v283 = vsel %vm162, %v282, %v281
    %v284 = vsub.s32 4, %v260
    %v285 = vsel %vm162, %v284, %v260
    %v286 = vsel %vm161, %v156, %v283
    %v287 = vsel %vm161, 0, %v285
    %v288 = vmul.f32 %v286, %v286
    %v289 = vmul.f32 %v288, -0.001358992
    %v290 = vadd.f32 %v289, 0.041655596
    %v291 = vmul.f32 %v288, %v290
    %v292 = vadd.f32 %v291, -0.4999988
    %v293 = vmul.f32 %v288, %v292
    %v294 = vadd.f32 1.0, %v293
    %v295 = vmul.f32 %v286, %v286
    %v296 = vmul.f32 %v295, -0.00019511016
    %v297 = vadd.f32 %v296, 0.008332121
    %v298 = vmul.f32 %v295, %v297
    %v299 = vadd.f32 %v298, -0.16666654
    %v300 = vmul.f32 %v295, %v299
    %v301 = vadd.f32 %v300, 1.0
    %v302 = vmul.f32 %v301, %v286
    %vm303 = vweird.f32 %v156
    %v304 = vadd.s32 %v287, 3
    %v305 = vand.u32 %v304, 3
    %vm306 = vcmp.lt.s32.totalorder %v305, 2
    %vm307 = vcmp.eq.s32.totalorder %v305, 0
    %v308 = vxor.u32 %v302, 2147483648
    %v309 = vsel %vm307, %v294, %v308
    %vm310 = vcmp.eq.s32.totalorder %v305, 2
    %v311 = vxor.u32 %v294, 2147483648
    %v312 = vsel %vm310, %v311, %v302
    %v313 = vsel %vm306, %v309, %v312
    %v314 = vsel %vm303, nan, %v313
    %v315 = vand.u32 2147483647, %v157
    %vm316 = vcmp.le.f32.partialorder %v315, 0.7853982
    %vm317 = vcmp.lt.s32.totalorder %v157, 0
    %v318 = vand.u32 %v157, 2139095040
    %v319 = vshrl.u32 %v318, 23
    %v320 = vsub.s32 %v319, 127
    %v321 = vand.u32 2147483647, %v157
    %v322 = vand.u32 %v321, 8388607
    %v323 = vor.u32 %v322, 8388608
    %v324 = vsub.s32 0, %v323
    %v325 = vadd.s32 %v320, 1
    %vm326 = vcmp.gt.s32.totalorder %v325, 0
    %v327 = vsel %vm326, %v325, 0
    %v328 = vshrl.u32 %v327, 5
    %v329 = vand.u32 %v327, 31
    %v330 = vsub.s32 32, %v329
    %v331 = vshrl.u32 683565275, %v330
    %v332 = vshll.u32 683565275, %v329
    %v333 = vshrl.u32 2475754826, %v330
    %v334 = vor.u32 %v332, %v333
    %v335 = vshll.u32 2475754826, %v329
    %v336 = vshrl.u32 2131351028, %v330
    %v337 = vor.u32 %v335, %v336
    %v338 = vshll.u32 2131351028, %v329
    %v339 = vshrl.u32 2102212464, %v330
    %v340 = vor.u32 %v338, %v339
    %v341 = vshll.u32 2102212464, %v329
    %v342 = vshrl.u32 920167782, %v330
    %v343 = vor.u32 %v341, %v342
    %v344 = vshll.u32 920167782, %v329
    %v345 = vshrl.u32 1326507024, %v330
    %v346 = vor.u32 %v344, %v345
    %vm347 = vcmp.lt.s32.totalorder %v328, 1
    %vm348 = vcmp.lt.s32.totalorder %v328, 2
    %vm349 = vcmp.lt.s32.totalorder %v328, 3
    %vm350 = vcmp.lt.s32.totalorder %v328, 4
    %v351 = vsel %vm347, %v331, %v334
    %v352 = vsel %vm350, %v340, 2102212464
    %v353 = vsel %vm349, %v337, %v352
    %v354 = vsel %vm348, %v351, %v353
    %v355 = vsel %vm347, %v334, %v337
    %v356 = vsel %vm350, %v343, 920167782
    %v357 = vsel %vm349, %v340, %v356
    %v358 = vsel %vm348, %v355, %v357
    %v359 = vsel %vm347, %v337, %v340
    %v360 = vsel %vm350, %v346, 1326507024
    %v361 = vsel %vm349, %v343, %v360
    %v362 = vsel %vm348, %v359, %v361
    %v363 = vshll.u32 %v323, 8
    %v364 = vand.u32 %v363, 65535
    %v365 = vshrl.u32 %v363, 16
    %v366 = vand.u32 %v362, 65535
    %v367 = vshrl.u32 %v362, 16
    %v368 = vmul.u32 %v364, %v366
    %v369 = vmul.u32 %v364, %v367
    %v370 = vmul.u32 %v365, %v366
    %v371 = vmul.u32 %v365, %v367
    %v372 = vshll.u32 %v369, 16
    %v373 = vshrl.u32 %v369, 16
    %v374 = vshll.u32 %v370, 16
    %v375 = vshrl.u32 %v370, 16
    %vm376 = vc.u32 %v368, %v372
    %v377 = vsel %vm376, 1, 0
    %v378 = vadd.s32 %v368, %v372
    %v379 = vadd.s32 %v371, %v377
    %vm380 = vc.u32 %v378, %v374
    %v381 = vsel %vm380, 1, 0
    %v382 = vadd.s32 %v378, %v374
    %v383 = vadd.s32 %v379, %v381
    %v384 = vadd.s32 %v383, %v373
    %v385 = vadd.s32 %v384, %v375
    %v386 = vand.u32 %v363, 65535
    %v387 = vshrl.u32 %v363, 16
    %v388 = vand.u32 %v358, 65535
    %v389 = vshrl.u32 %v358, 16
    %v390 = vmul.u32 %v386, %v388
    %v391 = vmul.u32 %v386, %v389
    %v392 = vmul.u32 %v387, %v388
    %v393 = vmul.u32 %v387, %v389
    %v394 = vshll.u32 %v391, 16
    %v395 = vshrl.u32 %v391, 16
    %v396 = vshll.u32 %v392, 16
    %v397 = vshrl.u32 %v392, 16
    %vm398 = vc.u32 %v390, %v394
    %v399 = vsel %vm398, 1, 0
    %v400 = vadd.s32 %v390, %v394
    %v401 = vadd.s32 %v393, %v399
    %vm402 = vc.u32 %v400, %v396
    %v403 = vsel %vm402, 1, 0
    %v404 = vadd.s32 %v400, %v396
    %v405 = vadd.s32 %v401, %v403
    %v406 = vadd.s32 %v405, %v395
    %v407 = vadd.s32 %v406, %v397
    %v408 = vmul.u32 %v363, %v354
    %v409 = vadd.s32 %v385, %v404
    %vm410 = vc.u32 %v385, %v404
    %v411 = vadd.s32 %v407, 1
    %v412 = vsel %vm410, %v411, %v407
    %v413 = vadd.s32 %v408, %v412
    %v414 = vadd.s32 %v413, 536870912
    %v415 = vshrl.u32 %v414, 30
    %v416 = vshll.u32 %v415, 30
    %v417 = vsub.s32 %v413, %v416
    %vm418 = vcmp.lt.s32.totalorder %v417, 0
    %v419 = vsub.s32 0, %v417
    %v420 = vsel %vm418, %v419, %v417
    %v421 = vclz %v420
    %v422 = vsub.s32 %v421, 2
    %vm423 = vcmp.gt.s32.totalorder 0, %v422
    %v424 = vsel %vm423, 0, %v422
    %v425 = vsub.s32 32, %v424
    %v426 = vshll.u32 %v417, %v424
    %v427 = vshrl.u32 %v409, %v425
    %v428 = vor.u32 %v426, %v427
    %v429 = vsub.s32 4294967266, %v424
    %v430 = vadd.s32 %v429, 127
    %v431 = vshll.u32 %v430, 23
    %v432 = vor.u32 4788187, %v431
    %v433 = vand.u32 2147483647, %v432
    %v435 = vcvt.s32.f32 %v428
    %v436 = vmul.f32 %v435, %v433
    %v437 = vxor.u32 %v436, 2147483648
    %v438 = vsel %vm317, %v437, %v436
    %v439 = vsub.s32 4, %v415
    %v440 = vsel %vm317, %v439, %v415
    %v441 = vsel %vm316, %v157, %v438
    %v442 = vsel %vm316, 0, %v440
    %v443 = vmul.f32 %v441, %v441
    %v444 = vmul.f32 %v443, -0.001358992
    %v445 = vadd.f32 %v444, 0.041655596
    %v446 = vmul.f32 %v443, %v445
    %v447 = vadd.f32 %v446, -0.4999988
    %v448 = vmul.f32 %v443, %v447
    %v449 = vadd.f32 1.0, %v448
    %v450 = vmul.f32 %v441, %v441
    %v451 = vmul.f32 %v450, -0.00019511016
    %v452 = vadd.f32 %v451, 0.008332121
    %v453 = vmul.f32 %v450, %v452
    %v454 = vadd.f32 %v453, -0.16666654
    %v455 = vmul.f32 %v450, %v454
    %v456 = vadd.f32 %v455, 1.0
    %v457 = vmul.f32 %v456, %v441
    %vm458 = vweird.f32 %v157
    %v459 = vadd.s32 %v442, 3
    %v460 = vand.u32 %v459, 3
    %vm461 = vcmp.lt.s32.totalorder %v460, 2
    %vm462 = vcmp.eq.s32.totalorder %v460, 0
    %v463 = vxor.u32 %v457, 2147483648
    %v464 = vsel %vm462, %v449, %v463
    %vm465 = vcmp.eq.s32.totalorder %v460, 2
    %v466 = vxor.u32 %v449, 2147483648
    %v467 = vsel %vm465, %v466, %v457
    %v468 = vsel %vm461, %v464, %v467
    %v469 = vsel %vm458, nan, %v468
    %v470 = vand.u32 2147483647, %v158
    %vm471 = vcmp.le.f32.partialorder %v470, 0.7853982
    %vm472 = vcmp.lt.s32.totalorder %v158, 0
    %v473 = vand.u32 %v158, 2139095040
    %v474 = vshrl.u32 %v473, 23
    %v475 = vsub.s32 %v474, 127
    %v476 = vand.u32 2147483647, %v158
    %v477 = vand.u32 %v476, 8388607
    %v478 = vor.u32 %v477, 8388608
    %v479 = vsub.s32 0, %v478
    %v480 = vadd.s32 %v475, 1
    %vm481 = vcmp.gt.s32.totalorder %v480, 0
    %v482 = vsel %vm481, %v480, 0
    %v483 = vshrl.u32 %v482, 5
    %v484 = vand.u32 %v482, 31
    %v485 = vsub.s32 32, %v484
    %v486 = vshrl.u32 683565275, %v485
    %v487 = vshll.u32 683565275, %v484
    %v488 = vshrl.u32 2475754826, %v485
    %v489 = vor.u32 %v487, %v488
    %v490 = vshll.u32 2475754826, %v484
    %v491 = vshrl.u32 2131351028, %v485
    %v492 = vor.u32 %v490, %v491
    %v493 = vshll.u32 2131351028, %v484
    %v494 = vshrl.u32 2102212464, %v485
    %v495 = vor.u32 %v493, %v494
    %v496 = vshll.u32 2102212464, %v484
    %v497 = vshrl.u32 920167782, %v485
    %v498 = vor.u32 %v496, %v497
    %v499 = vshll.u32 920167782, %v484
    %v500 = vshrl.u32 1326507024, %v485
    %v501 = vor.u32 %v499, %v500
    %vm502 = vcmp.lt.s32.totalorder %v483, 1
    %vm503 = vcmp.lt.s32.totalorder %v483, 2
    %vm504 = vcmp.lt.s32.totalorder %v483, 3
    %vm505 = vcmp.lt.s32.totalorder %v483, 4
    %v506 = vsel %vm502, %v486, %v489
    %v507 = vsel %vm505, %v495, 2102212464
    %v508 = vsel %vm504, %v492, %v507
    %v509 = vsel %vm503, %v506, %v508
    %v510 = vsel %vm502, %v489, %v492
    %v511 = vsel %vm505, %v498, 920167782
    %v512 = vsel %vm504, %v495, %v511
    %v513 = vsel %vm503, %v510, %v512
    %v514 = vsel %vm502, %v492, %v495
    %v515 = vsel %vm505, %v501, 1326507024
    %v516 = vsel %vm504, %v498, %v515
    %v517 = vsel %vm503, %v514, %v516
    %v518 = vshll.u32 %v478, 8
    %v519 = vand.u32 %v518, 65535
    %v520 = vshrl.u32 %v518, 16
    %v521 = vand.u32 %v517, 65535
    %v522 = vshrl.u32 %v517, 16
    %v523 = vmul.u32 %v519, %v521
    %v524 = vmul.u32 %v519, %v522
    %v525 = vmul.u32 %v520, %v521
    %v526 = vmul.u32 %v520, %v522
    %v527 = vshll.u32 %v524, 16
    %v528 = vshrl.u32 %v524, 16
    %v529 = vshll.u32 %v525, 16
    %v530 = vshrl.u32 %v525, 16
    %vm531 = vc.u32 %v523, %v527
    %v532 = vsel %vm531, 1, 0
    %v533 = vadd.s32 %v523, %v527
    %v534 = vadd.s32 %v526, %v532
    %vm535 = vc.u32 %v533, %v529
    %v536 = vsel %vm535, 1, 0
    %v537 = vadd.s32 %v533, %v529
    %v538 = vadd.s32 %v534, %v536
    %v539 = vadd.s32 %v538, %v528
    %v540 = vadd.s32 %v539, %v530
    %v541 = vand.u32 %v518, 65535
    %v542 = vshrl.u32 %v518, 16
    %v543 = vand.u32 %v513, 65535
    %v544 = vshrl.u32 %v513, 16
    %v545 = vmul.u32 %v541, %v543
    %v546 = vmul.u32 %v541, %v544
    %v547 = vmul.u32 %v542, %v543
    %v548 = vmul.u32 %v542, %v544
    %v549 = vshll.u32 %v546, 16
    %v550 = vshrl.u32 %v546, 16
    %v551 = vshll.u32 %v547, 16
    %v552 = vshrl.u32 %v547, 16
    %vm553 = vc.u32 %v545, %v549
    %v554 = vsel %vm553, 1, 0
    %v555 = vadd.s32 %v545, %v549
    %v556 = vadd.s32 %v548, %v554
    %vm557 = vc.u32 %v555, %v551
    %v558 = vsel %vm557, 1, 0
    %v559 = vadd.s32 %v555, %v551
    %v560 = vadd.s32 %v556, %v558
    %v561 = vadd.s32 %v560, %v550
    %v562 = vadd.s32 %v561, %v552
    %v563 = vmul.u32 %v518, %v509
    %v564 = vadd.s32 %v540, %v559
    %vm565 = vc.u32 %v540, %v559
    %v566 = vadd.s32 %v562, 1
    %v567 = vsel %vm565, %v566, %v562
    %v568 = vadd.s32 %v563, %v567
    %v569 = vadd.s32 %v568, 536870912
    %v570 = vshrl.u32 %v569, 30
    %v571 = vshll.u32 %v570, 30
    %v572 = vsub.s32 %v568, %v571
    %vm573 = vcmp.lt.s32.totalorder %v572, 0
    %v574 = vsub.s32 0, %v572
    %v575 = vsel %vm573, %v574, %v572
    %v576 = vclz %v575
    %v577 = vsub.s32 %v576, 2
    %vm578 = vcmp.gt.s32.totalorder 0, %v577
    %v579 = vsel %vm578, 0, %v577
    %v580 = vsub.s32 32, %v579
    %v581 = vshll.u32 %v572, %v579
    %v582 = vshrl.u32 %v564, %v580
    %v583 = vor.u32 %v581, %v582
    %v584 = vsub.s32 4294967266, %v579
    %v585 = vadd.s32 %v584, 127
    %v586 = vshll.u32 %v585, 23
    %v587 = vor.u32 4788187, %v586
    %v588 = vand.u32 2147483647, %v587
    %v590 = vcvt.s32.f32 %v583
    %v591 = vmul.f32 %v590, %v588
    %v592 = vxor.u32 %v591, 2147483648
    %v593 = vsel %vm472, %v592, %v591
    %v594 = vsub.s32 4, %v570
    %v595 = vsel %vm472, %v594, %v570
    %v596 = vsel %vm471, %v158, %v593
    %v597 = vsel %vm471, 0, %v595
    %v598 = vmul.f32 %v596, %v596
    %v599 = vmul.f32 %v598, -0.001358992
    %v600 = vadd.f32 %v599, 0.041655596
    %v601 = vmul.f32 %v598, %v600
    %v602 = vadd.f32 %v601, -0.4999988
    %v603 = vmul.f32 %v598, %v602
    %v604 = vadd.f32 1.0, %v603
    %v605 = vmul.f32 %v596, %v596
    %v606 = vmul.f32 %v605, -0.00019511016
    %v607 = vadd.f32 %v606, 0.008332121
    %v608 = vmul.f32 %v605, %v607
    %v609 = vadd.f32 %v608, -0.16666654
    %v610 = vmul.f32 %v605, %v609
    %v611 = vadd.f32 %v610, 1.0
    %v612 = vmul.f32 %v611, %v596
    %vm613 = vweird.f32 %v158
    %v614 = vadd.s32 %v597, 3
    %v615 = vand.u32 %v614, 3
    %vm616 = vcmp.lt.s32.totalorder %v615, 2
    %vm617 = vcmp.eq.s32.totalorder %v615, 0
    %v618 = vxor.u32 %v612, 2147483648
    %v619 = vsel %vm617, %v604, %v618
    %vm620 = vcmp.eq.s32.totalorder %v615, 2
    %v621 = vxor.u32 %v604, 2147483648
    %v622 = vsel %vm620, %v621, %v612
    %v623 = vsel %vm616, %v619, %v622
    %v624 = vsel %vm613, nan, %v623
    %v625 = vand.u32 2147483647, %v159
    %vm626 = vcmp.le.f32.partialorder %v625, 0.7853982
    %vm627 = vcmp.lt.s32.totalorder %v159, 0
    %v628 = vand.u32 %v159, 2139095040
    %v629 = vshrl.u32 %v628, 23
    %v630 = vsub.s32 %v629, 127
    %v631 = vand.u32 2147483647, %v159
    %v632 = vand.u32 %v631, 8388607
    %v633 = vor.u32 %v632, 8388608
    %v634 = vsub.s32 0, %v633
    %v635 = vadd.s32 %v630, 1
    %vm636 = vcmp.gt.s32.totalorder %v635, 0
    %v637 = vsel %vm636, %v635, 0
    %v638 = vshrl.u32 %v637, 5
    %v639 = vand.u32 %v637, 31
    %v640 = vsub.s32 32, %v639
    %v641 = vshrl.u32 683565275, %v640
    %v642 = vshll.u32 683565275, %v639
    %v643 = vshrl.u32 2475754826, %v640
    %v644 = vor.u32 %v642, %v643
    %v645 = vshll.u32 2475754826, %v639
    %v646 = vshrl.u32 2131351028, %v640
    %v647 = vor.u32 %v645, %v646
    %v648 = vshll.u32 2131351028, %v639
    %v649 = vshrl.u32 2102212464, %v640
    %v650 = vor.u32 %v648, %v649
    %v651 = vshll.u32 2102212464, %v639
    %v652 = vshrl.u32 920167782, %v640
    %v653 = vor.u32 %v651, %v652
    %v654 = vshll.u32 920167782, %v639
    %v655 = vshrl.u32 1326507024, %v640
    %v656 = vor.u32 %v654, %v655
    %vm657 = vcmp.lt.s32.totalorder %v638, 1
    %vm658 = vcmp.lt.s32.totalorder %v638, 2
    %vm659 = vcmp.lt.s32.totalorder %v638, 3
    %vm660 = vcmp.lt.s32.totalorder %v638, 4
    %v661 = vsel %vm657, %v641, %v644
    %v662 = vsel %vm660, %v650, 2102212464
    %v663 = vsel %vm659, %v647, %v662
    %v664 = vsel %vm658, %v661, %v663
    %v665 = vsel %vm657, %v644, %v647
    %v666 = vsel %vm660, %v653, 920167782
    %v667 = vsel %vm659, %v650, %v666
    %v668 = vsel %vm658, %v665, %v667
    %v669 = vsel %vm657, %v647, %v650
    %v670 = vsel %vm660, %v656, 1326507024
    %v671 = vsel %vm659, %v653, %v670
    %v672 = vsel %vm658, %v669, %v671
    %v673 = vshll.u32 %v633, 8
    %v674 = vand.u32 %v673, 65535
    %v675 = vshrl.u32 %v673, 16
    %v676 = vand.u32 %v672, 65535
    %v677 = vshrl.u32 %v672, 16
    %v678 = vmul.u32 %v674, %v676
    %v679 = vmul.u32 %v674, %v677
    %v680 = vmul.u32 %v675, %v676
    %v681 = vmul.u32 %v675, %v677
    %v682 = vshll.u32 %v679, 16
    %v683 = vshrl.u32 %v679, 16
    %v684 = vshll.u32 %v680, 16
    %v685 = vshrl.u32 %v680, 16
    %vm686 = vc.u32 %v678, %v682
    %v687 = vsel %vm686, 1, 0
    %v688 = vadd.s32 %v678, %v682
    %v689 = vadd.s32 %v681, %v687
    %vm690 = vc.u32 %v688, %v684
    %v691 = vsel %vm690, 1, 0
    %v692 = vadd.s32 %v688, %v684
    %v693 = vadd.s32 %v689, %v691
    %v694 = vadd.s32 %v693, %v683
    %v695 = vadd.s32 %v694, %v685
    %v696 = vand.u32 %v673, 65535
    %v697 = vshrl.u32 %v673, 16
    %v698 = vand.u32 %v668, 65535
    %v699 = vshrl.u32 %v668, 16
    %v700 = vmul.u32 %v696, %v698
    %v701 = vmul.u32 %v696, %v699
    %v702 = vmul.u32 %v697, %v698
    %v703 = vmul.u32 %v697, %v699
    %v704 = vshll.u32 %v701, 16
    %v705 = vshrl.u32 %v701, 16
    %v706 = vshll.u32 %v702, 16
    %v707 = vshrl.u32 %v702, 16
    %vm708 = vc.u32 %v700, %v704
    %v709 = vsel %vm708, 1, 0
    %v710 = vadd.s32 %v700, %v704
    %v711 = vadd.s32 %v703, %v709
    %vm712 = vc.u32 %v710, %v706
    %v713 = vsel %vm712, 1, 0
    %v714 = vadd.s32 %v710, %v706
    %v715 = vadd.s32 %v711, %v713
    %v716 = vadd.s32 %v715, %v705
    %v717 = vadd.s32 %v716, %v707
    %v718 = vmul.u32 %v673, %v664
    %v719 = vadd.s32 %v695, %v714
    %vm720 = vc.u32 %v695, %v714
    %v721 = vadd.s32 %v717, 1
    %v722 = vsel %vm720, %v721, %v717
    %v723 = vadd.s32 %v718, %v722
    %v724 = vadd.s32 %v723, 536870912
    %v725 = vshrl.u32 %v724, 30
    %v726 = vshll.u32 %v725, 30
    %v727 = vsub.s32 %v723, %v726
    %vm728 = vcmp.lt.s32.totalorder %v727, 0
    %v729 = vsub.s32 0, %v727
    %v730 = vsel %vm728, %v729, %v727
    %v731 = vclz %v730
    %v732 = vsub.s32 %v731, 2
    %vm733 = vcmp.gt.s32.totalorder 0, %v732
    %v734 = vsel %vm733, 0, %v732
    %v735 = vsub.s32 32, %v734
    %v736 = vshll.u32 %v727, %v734
    %v737 = vshrl.u32 %v719, %v735
    %v738 = vor.u32 %v736, %v737
    %v739 = vsub.s32 4294967266, %v734
    %v740 = vadd.s32 %v739, 127
    %v741 = vshll.u32 %v740, 23
    %v742 = vor.u32 4788187, %v741
    %v743 = vand.u32 2147483647, %v742
    %v745 = vcvt.s32.f32 %v738
    %v746 = vmul.f32 %v745, %v743
    %v747 = vxor.u32 %v746, 2147483648
    %v748 = vsel %vm627, %v747, %v746
    %v749 = vsub.s32 4, %v725
    %v750 = vsel %vm627, %v749, %v725
    %v751 = vsel %vm626, %v159, %v748
    %v752 = vsel %vm626, 0, %v750
    %v753 = vmul.f32 %v751, %v751
    %v754 = vmul.f32 %v753, -0.001358992
    %v755 = vadd.f32 %v754, 0.041655596
    %v756 = vmul.f32 %v753, %v755
    %v757 = vadd.f32 %v756, -0.4999988
    %v758 = vmul.f32 %v753, %v757
    %v759 = vadd.f32 1.0, %v758
    %v760 = vmul.f32 %v751, %v751
    %v761 = vmul.f32 %v760, -0.00019511016
    %v762 = vadd.f32 %v761, 0.008332121
    %v763 = vmul.f32 %v760, %v762
    %v764 = vadd.f32 %v763, -0.16666654
    %v765 = vmul.f32 %v760, %v764
    %v766 = vadd.f32 %v765, 1.0
    %v767 = vmul.f32 %v766, %v751
    %vm768 = vweird.f32 %v159
    %v769 = vadd.s32 %v752, 3
    %v770 = vand.u32 %v769, 3
    %vm771 = vcmp.lt.s32.totalorder %v770, 2
    %vm772 = vcmp.eq.s32.totalorder %v770, 0
    %v773 = vxor.u32 %v767, 2147483648
    %v774 = vsel %vm772, %v759, %v773
    %vm775 = vcmp.eq.s32.totalorder %v770, 2
    %v776 = vxor.u32 %v759, 2147483648
    %v777 = vsel %vm775, %v776, %v767
    %v778 = vsel %vm771, %v774, %v777
    %v779 = vsel %vm768, nan, %v778
    %s780 = scalar_lea.vmem %s1, 1
    %v781 = vld [vmem:[%s780] ss:$4 sm:$0x3]
    %s782 = scalar_lea.vmem %s2, 1
    %v783 = vld [vmem:[%s782] ss:$4 sm:$0x3]
    %v785 = vperm.slane %v781, 0
    %v786 = vperm.slane %v781, 1
    %v789 = vmul.f32 %v314, %v785
    %v790 = vmul.f32 %v469, %v786
    %v791 = vmul.f32 %v624, %v785
    %v792 = vmul.f32 %v779, %v786
    %793 = vrot.lane.b32.xlu0 %v789, 1
    %v794 = vpop.permute.xlu0 %793
    %795 = vrot.lane.b32.xlu0 %v791, 1
    %v796 = vpop.permute.xlu0 %795
    %797 = vrot.lane.b32.xlu0 %v790, 1
    %v798 = vpop.permute.xlu0 %797
    %799 = vrot.lane.b32.xlu0 %v792, 1
    %v800 = vpop.permute.xlu0 %799
    %v801 = vsel %vm50, %v794, %v798
    %v802 = vsel %vm50, %v796, %v800
    %v803 = vsel %vm50, %v798, %v794
    %v804 = vsel %vm50, %v800, %v796
    %v805 = vmul.f32 %v803, %v60
    %v806 = vmul.f32 %v801, %v61
    %v807 = vmul.f32 %v804, %v60
    %v808 = vmul.f32 %v802, %v61
    %809 = vrot.lane.b32.xlu0 %v789, 127
    %v810 = vpop.permute.xlu0 %809
    %811 = vrot.lane.b32.xlu0 %v791, 127
    %v812 = vpop.permute.xlu0 %811
    %813 = vrot.lane.b32.xlu0 %v790, 127
    %v814 = vpop.permute.xlu0 %813
    %815 = vrot.lane.b32.xlu0 %v792, 127
    %v816 = vpop.permute.xlu0 %815
    %v817 = vsel %vm74, %v810, %v814
    %v818 = vsel %vm74, %v812, %v816
    %v819 = vsel %vm74, %v814, %v810
    %v820 = vsel %vm74, %v816, %v812
    %v821 = vmul.f32 %v817, %v83
    %v822 = vmul.f32 %v819, %v84
    %v823 = vmul.f32 %v818, %v83
    %v824 = vmul.f32 %v820, %v84
    %v825 = vadd.f32 %v805, %v789
    %v826 = vadd.f32 %v806, %v790
    %v827 = vadd.f32 %v807, %v791
    %v828 = vadd.f32 %v808, %v792
    %v829 = vadd.f32 %v825, %v821
    %v830 = vadd.f32 %v826, %v822
    %v831 = vadd.f32 %v827, %v823
    %v832 = vadd.f32 %v828, %v824
    %833 = vrot.lane.b32.xlu0 %v829, 16
    %v834 = vpop.permute.xlu0 %833
    %835 = vrot.lane.b32.xlu0 %v831, 16
    %v836 = vpop.permute.xlu0 %835
    %837 = vrot.lane.b32.xlu0 %v830, 16
    %v838 = vpop.permute.xlu0 %837
    %839 = vrot.lane.b32.xlu0 %v832, 16
    %v840 = vpop.permute.xlu0 %839
    %v841 = vsel %vm105, %v834, %v838
    %v842 = vsel %vm105, %v836, %v840
    %v843 = vsel %vm105, %v838, %v834
    %v844 = vsel %vm105, %v840, %v836
    %v845 = vmul.f32 %v843, %v114
    %v846 = vmul.f32 %v841, %v115
    %v847 = vmul.f32 %v844, %v114
    %v848 = vmul.f32 %v842, %v115
    %849 = vrot.lane.b32.xlu0 %v829, 112
    %v850 = vpop.permute.xlu0 %849
    %851 = vrot.lane.b32.xlu0 %v831, 112
    %v852 = vpop.permute.xlu0 %851
    %853 = vrot.lane.b32.xlu0 %v830, 112
    %v854 = vpop.permute.xlu0 %853
    %855 = vrot.lane.b32.xlu0 %v832, 112
    %v856 = vpop.permute.xlu0 %855
    %v857 = vsel %vm128, %v850, %v854
    %v858 = vsel %vm128, %v852, %v856
    %v859 = vsel %vm128, %v854, %v850
    %v860 = vsel %vm128, %v856, %v852
    %v861 = vmul.f32 %v857, %v137
    %v862 = vmul.f32 %v859, %v138
    %v863 = vmul.f32 %v858, %v137
    %v864 = vmul.f32 %v860, %v138
    %v865 = vadd.f32 %v845, %v829
    %v866 = vadd.f32 %v846, %v830
    %v867 = vadd.f32 %v847, %v831
    %v868 = vadd.f32 %v848, %v832
    %v869 = vadd.f32 %v865, %v861
    %v870 = vadd.f32 %v866, %v862
    %v871 = vadd.f32 %v867, %v863
    %v872 = vadd.f32 %v868, %v864
    %v874 = vperm.slane %v783, 0
    %v875 = vperm.slane %v783, 1
    %v878 = vadd.f32 %v869, %v874
    %v879 = vadd.f32 %v870, %v875
    %v880 = vadd.f32 %v871, %v874
    %v881 = vadd.f32 %v872, %v875
    %v882 = vand.u32 2147483647, %v878
    %vm883 = vcmp.le.f32.partialorder %v882, 0.7853982
    %vm884 = vcmp.lt.s32.totalorder %v878, 0
    %v885 = vand.u32 %v878, 2139095040
    %v886 = vshrl.u32 %v885, 23
    %v887 = vsub.s32 %v886, 127
    %v888 = vand.u32 2147483647, %v878
    %v889 = vand.u32 %v888, 8388607
    %v890 = vor.u32 %v889, 8388608
    %v891 = vsub.s32 0, %v890
    %v892 = vadd.s32 %v887, 1
    %vm893 = vcmp.gt.s32.totalorder %v892, 0
    %v894 = vsel %vm893, %v892, 0
    %v895 = vshrl.u32 %v894, 5
    %v896 = vand.u32 %v894, 31
    %v897 = vsub.s32 32, %v896
    %v898 = vshrl.u32 683565275, %v897
    %v899 = vshll.u32 683565275, %v896
    %v900 = vshrl.u32 2475754826, %v897
    %v901 = vor.u32 %v899, %v900
    %v902 = vshll.u32 2475754826, %v896
    %v903 = vshrl.u32 2131351028, %v897
    %v904 = vor.u32 %v902, %v903
    %v905 = vshll.u32 2131351028, %v896
    %v906 = vshrl.u32 2102212464, %v897
    %v907 = vor.u32 %v905, %v906
    %v908 = vshll.u32 2102212464, %v896
    %v909 = vshrl.u32 920167782, %v897
    %v910 = vor.u32 %v908, %v909
    %v911 = vshll.u32 920167782, %v896
    %v912 = vshrl.u32 1326507024, %v897
    %v913 = vor.u32 %v911, %v912
    %vm914 = vcmp.lt.s32.totalorder %v895, 1
    %vm915 = vcmp.lt.s32.totalorder %v895, 2
    %vm916 = vcmp.lt.s32.totalorder %v895, 3
    %vm917 = vcmp.lt.s32.totalorder %v895, 4
    %v918 = vsel %vm914, %v898, %v901
    %v919 = vsel %vm917, %v907, 2102212464
    %v920 = vsel %vm916, %v904, %v919
    %v921 = vsel %vm915, %v918, %v920
    %v922 = vsel %vm914, %v901, %v904
    %v923 = vsel %vm917, %v910, 920167782
    %v924 = vsel %vm916, %v907, %v923
    %v925 = vsel %vm915, %v922, %v924
    %v926 = vsel %vm914, %v904, %v907
    %v927 = vsel %vm917, %v913, 1326507024
    %v928 = vsel %vm916, %v910, %v927
    %v929 = vsel %vm915, %v926, %v928
    %v930 = vshll.u32 %v890, 8
    %v931 = vand.u32 %v930, 65535
    %v932 = vshrl.u32 %v930, 16
    %v933 = vand.u32 %v929, 65535
    %v934 = vshrl.u32 %v929, 16
    %v935 = vmul.u32 %v931, %v933
    %v936 = vmul.u32 %v931, %v934
    %v937 = vmul.u32 %v932, %v933
    %v938 = vmul.u32 %v932, %v934
    %v939 = vshll.u32 %v936, 16
    %v940 = vshrl.u32 %v936, 16
    %v941 = vshll.u32 %v937, 16
    %v942 = vshrl.u32 %v937, 16
    %vm943 = vc.u32 %v935, %v939
    %v944 = vsel %vm943, 1, 0
    %v945 = vadd.s32 %v935, %v939
    %v946 = vadd.s32 %v938, %v944
    %vm947 = vc.u32 %v945, %v941
    %v948 = vsel %vm947, 1, 0
    %v949 = vadd.s32 %v945, %v941
    %v950 = vadd.s32 %v946, %v948
    %v951 = vadd.s32 %v950, %v940
    %v952 = vadd.s32 %v951, %v942
    %v953 = vand.u32 %v930, 65535
    %v954 = vshrl.u32 %v930, 16
    %v955 = vand.u32 %v925, 65535
    %v956 = vshrl.u32 %v925, 16
    %v957 = vmul.u32 %v953, %v955
    %v958 = vmul.u32 %v953, %v956
    %v959 = vmul.u32 %v954, %v955
    %v960 = vmul.u32 %v954, %v956
    %v961 = vshll.u32 %v958, 16
    %v962 = vshrl.u32 %v958, 16
    %v963 = vshll.u32 %v959, 16
    %v964 = vshrl.u32 %v959, 16
    %vm965 = vc.u32 %v957, %v961
    %v966 = vsel %vm965, 1, 0
    %v967 = vadd.s32 %v957, %v961
    %v968 = vadd.s32 %v960, %v966
    %vm969 = vc.u32 %v967, %v963
    %v970 = vsel %vm969, 1, 0
    %v971 = vadd.s32 %v967, %v963
    %v972 = vadd.s32 %v968, %v970
    %v973 = vadd.s32 %v972, %v962
    %v974 = vadd.s32 %v973, %v964
    %v975 = vmul.u32 %v930, %v921
    %v976 = vadd.s32 %v952, %v971
    %vm977 = vc.u32 %v952, %v971
    %v978 = vadd.s32 %v974, 1
    %v979 = vsel %vm977, %v978, %v974
    %v980 = vadd.s32 %v975, %v979
    %v981 = vadd.s32 %v980, 536870912
    %v982 = vshrl.u32 %v981, 30
    %v983 = vshll.u32 %v982, 30
    %v984 = vsub.s32 %v980, %v983
    %vm985 = vcmp.lt.s32.totalorder %v984, 0
    %v986 = vsub.s32 0, %v984
    %v987 = vsel %vm985, %v986, %v984
    %v988 = vclz %v987
    %v989 = vsub.s32 %v988, 2
    %vm990 = vcmp.gt.s32.totalorder 0, %v989
    %v991 = vsel %vm990, 0, %v989
    %v992 = vsub.s32 32, %v991
    %v993 = vshll.u32 %v984, %v991
    %v994 = vshrl.u32 %v976, %v992
    %v995 = vor.u32 %v993, %v994
    %v996 = vsub.s32 4294967266, %v991
    %v997 = vadd.s32 %v996, 127
    %v998 = vshll.u32 %v997, 23
    %v999 = vor.u32 4788187, %v998
    %v1000 = vand.u32 2147483647, %v999
    %v1002 = vcvt.s32.f32 %v995
    %v1003 = vmul.f32 %v1002, %v1000
    %v1004 = vxor.u32 %v1003, 2147483648
    %v1005 = vsel %vm884, %v1004, %v1003
    %v1006 = vsub.s32 4, %v982
    %v1007 = vsel %vm884, %v1006, %v982
    %v1008 = vsel %vm883, %v878, %v1005
    %v1009 = vsel %vm883, 0, %v1007
    %v1010 = vmul.f32 %v1008, %v1008
    %v1011 = vmul.f32 %v1010, -0.001358992
    %v1012 = vadd.f32 %v1011, 0.041655596
    %v1013 = vmul.f32 %v1010, %v1012
    %v1014 = vadd.f32 %v1013, -0.4999988
    %v1015 = vmul.f32 %v1010, %v1014
    %v1016 = vadd.f32 1.0, %v1015
    %v1017 = vmul.f32 %v1008, %v1008
    %v1018 = vmul.f32 %v1017, -0.00019511016
    %v1019 = vadd.f32 %v1018, 0.008332121
    %v1020 = vmul.f32 %v1017, %v1019
    %v1021 = vadd.f32 %v1020, -0.16666654
    %v1022 = vmul.f32 %v1017, %v1021
    %v1023 = vadd.f32 %v1022, 1.0
    %v1024 = vmul.f32 %v1023, %v1008
    %vm1025 = vweird.f32 %v878
    %v1026 = vadd.s32 %v1009, 3
    %v1027 = vand.u32 %v1026, 3
    %vm1028 = vcmp.lt.s32.totalorder %v1027, 2
    %vm1029 = vcmp.eq.s32.totalorder %v1027, 0
    %v1030 = vxor.u32 %v1024, 2147483648
    %v1031 = vsel %vm1029, %v1016, %v1030
    %vm1032 = vcmp.eq.s32.totalorder %v1027, 2
    %v1033 = vxor.u32 %v1016, 2147483648
    %v1034 = vsel %vm1032, %v1033, %v1024
    %v1035 = vsel %vm1028, %v1031, %v1034
    %v1036 = vsel %vm1025, nan, %v1035
    %v1037 = vand.u32 2147483647, %v879
    %vm1038 = vcmp.le.f32.partialorder %v1037, 0.7853982
    %vm1039 = vcmp.lt.s32.totalorder %v879, 0
    %v1040 = vand.u32 %v879, 2139095040
    %v1041 = vshrl.u32 %v1040, 23
    %v1042 = vsub.s32 %v1041, 127
    %v1043 = vand.u32 2147483647, %v879
    %v1044 = vand.u32 %v1043, 8388607
    %v1045 = vor.u32 %v1044, 8388608
    %v1046 = vsub.s32 0, %v1045
    %v1047 = vadd.s32 %v1042, 1
    %vm1048 = vcmp.gt.s32.totalorder %v1047, 0
    %v1049 = vsel %vm1048, %v1047, 0
    %v1050 = vshrl.u32 %v1049, 5
    %v1051 = vand.u32 %v1049, 31
    %v1052 = vsub.s32 32, %v1051
    %v1053 = vshrl.u32 683565275, %v1052
    %v1054 = vshll.u32 683565275, %v1051
    %v1055 = vshrl.u32 2475754826, %v1052
    %v1056 = vor.u32 %v1054, %v1055
    %v1057 = vshll.u32 2475754826, %v1051
    %v1058 = vshrl.u32 2131351028, %v1052
    %v1059 = vor.u32 %v1057, %v1058
    %v1060 = vshll.u32 2131351028, %v1051
    %v1061 = vshrl.u32 2102212464, %v1052
    %v1062 = vor.u32 %v1060, %v1061
    %v1063 = vshll.u32 2102212464, %v1051
    %v1064 = vshrl.u32 920167782, %v1052
    %v1065 = vor.u32 %v1063, %v1064
    %v1066 = vshll.u32 920167782, %v1051
    %v1067 = vshrl.u32 1326507024, %v1052
    %v1068 = vor.u32 %v1066, %v1067
    %vm1069 = vcmp.lt.s32.totalorder %v1050, 1
    %vm1070 = vcmp.lt.s32.totalorder %v1050, 2
    %vm1071 = vcmp.lt.s32.totalorder %v1050, 3
    %vm1072 = vcmp.lt.s32.totalorder %v1050, 4
    %v1073 = vsel %vm1069, %v1053, %v1056
    %v1074 = vsel %vm1072, %v1062, 2102212464
    %v1075 = vsel %vm1071, %v1059, %v1074
    %v1076 = vsel %vm1070, %v1073, %v1075
    %v1077 = vsel %vm1069, %v1056, %v1059
    %v1078 = vsel %vm1072, %v1065, 920167782
    %v1079 = vsel %vm1071, %v1062, %v1078
    %v1080 = vsel %vm1070, %v1077, %v1079
    %v1081 = vsel %vm1069, %v1059, %v1062
    %v1082 = vsel %vm1072, %v1068, 1326507024
    %v1083 = vsel %vm1071, %v1065, %v1082
    %v1084 = vsel %vm1070, %v1081, %v1083
    %v1085 = vshll.u32 %v1045, 8
    %v1086 = vand.u32 %v1085, 65535
    %v1087 = vshrl.u32 %v1085, 16
    %v1088 = vand.u32 %v1084, 65535
    %v1089 = vshrl.u32 %v1084, 16
    %v1090 = vmul.u32 %v1086, %v1088
    %v1091 = vmul.u32 %v1086, %v1089
    %v1092 = vmul.u32 %v1087, %v1088
    %v1093 = vmul.u32 %v1087, %v1089
    %v1094 = vshll.u32 %v1091, 16
    %v1095 = vshrl.u32 %v1091, 16
    %v1096 = vshll.u32 %v1092, 16
    %v1097 = vshrl.u32 %v1092, 16
    %vm1098 = vc.u32 %v1090, %v1094
    %v1099 = vsel %vm1098, 1, 0
    %v1100 = vadd.s32 %v1090, %v1094
    %v1101 = vadd.s32 %v1093, %v1099
    %vm1102 = vc.u32 %v1100, %v1096
    %v1103 = vsel %vm1102, 1, 0
    %v1104 = vadd.s32 %v1100, %v1096
    %v1105 = vadd.s32 %v1101, %v1103
    %v1106 = vadd.s32 %v1105, %v1095
    %v1107 = vadd.s32 %v1106, %v1097
    %v1108 = vand.u32 %v1085, 65535
    %v1109 = vshrl.u32 %v1085, 16
    %v1110 = vand.u32 %v1080, 65535
    %v1111 = vshrl.u32 %v1080, 16
    %v1112 = vmul.u32 %v1108, %v1110
    %v1113 = vmul.u32 %v1108, %v1111
    %v1114 = vmul.u32 %v1109, %v1110
    %v1115 = vmul.u32 %v1109, %v1111
    %v1116 = vshll.u32 %v1113, 16
    %v1117 = vshrl.u32 %v1113, 16
    %v1118 = vshll.u32 %v1114, 16
    %v1119 = vshrl.u32 %v1114, 16
    %vm1120 = vc.u32 %v1112, %v1116
    %v1121 = vsel %vm1120, 1, 0
    %v1122 = vadd.s32 %v1112, %v1116
    %v1123 = vadd.s32 %v1115, %v1121
    %vm1124 = vc.u32 %v1122, %v1118
    %v1125 = vsel %vm1124, 1, 0
    %v1126 = vadd.s32 %v1122, %v1118
    %v1127 = vadd.s32 %v1123, %v1125
    %v1128 = vadd.s32 %v1127, %v1117
    %v1129 = vadd.s32 %v1128, %v1119
    %v1130 = vmul.u32 %v1085, %v1076
    %v1131 = vadd.s32 %v1107, %v1126
    %vm1132 = vc.u32 %v1107, %v1126
    %v1133 = vadd.s32 %v1129, 1
    %v1134 = vsel %vm1132, %v1133, %v1129
    %v1135 = vadd.s32 %v1130, %v1134
    %v1136 = vadd.s32 %v1135, 536870912
    %v1137 = vshrl.u32 %v1136, 30
    %v1138 = vshll.u32 %v1137, 30
    %v1139 = vsub.s32 %v1135, %v1138
    %vm1140 = vcmp.lt.s32.totalorder %v1139, 0
    %v1141 = vsub.s32 0, %v1139
    %v1142 = vsel %vm1140, %v1141, %v1139
    %v1143 = vclz %v1142
    %v1144 = vsub.s32 %v1143, 2
    %vm1145 = vcmp.gt.s32.totalorder 0, %v1144
    %v1146 = vsel %vm1145, 0, %v1144
    %v1147 = vsub.s32 32, %v1146
    %v1148 = vshll.u32 %v1139, %v1146
    %v1149 = vshrl.u32 %v1131, %v1147
    %v1150 = vor.u32 %v1148, %v1149
    %v1151 = vsub.s32 4294967266, %v1146
    %v1152 = vadd.s32 %v1151, 127
    %v1153 = vshll.u32 %v1152, 23
    %v1154 = vor.u32 4788187, %v1153
    %v1155 = vand.u32 2147483647, %v1154
    %v1157 = vcvt.s32.f32 %v1150
    %v1158 = vmul.f32 %v1157, %v1155
    %v1159 = vxor.u32 %v1158, 2147483648
    %v1160 = vsel %vm1039, %v1159, %v1158
    %v1161 = vsub.s32 4, %v1137
    %v1162 = vsel %vm1039, %v1161, %v1137
    %v1163 = vsel %vm1038, %v879, %v1160
    %v1164 = vsel %vm1038, 0, %v1162
    %v1165 = vmul.f32 %v1163, %v1163
    %v1166 = vmul.f32 %v1165, -0.001358992
    %v1167 = vadd.f32 %v1166, 0.041655596
    %v1168 = vmul.f32 %v1165, %v1167
    %v1169 = vadd.f32 %v1168, -0.4999988
    %v1170 = vmul.f32 %v1165, %v1169
    %v1171 = vadd.f32 1.0, %v1170
    %v1172 = vmul.f32 %v1163, %v1163
    %v1173 = vmul.f32 %v1172, -0.00019511016
    %v1174 = vadd.f32 %v1173, 0.008332121
    %v1175 = vmul.f32 %v1172, %v1174
    %v1176 = vadd.f32 %v1175, -0.16666654
    %v1177 = vmul.f32 %v1172, %v1176
    %v1178 = vadd.f32 %v1177, 1.0
    %v1179 = vmul.f32 %v1178, %v1163
    %vm1180 = vweird.f32 %v879
    %v1181 = vadd.s32 %v1164, 3
    %v1182 = vand.u32 %v1181, 3
    %vm1183 = vcmp.lt.s32.totalorder %v1182, 2
    %vm1184 = vcmp.eq.s32.totalorder %v1182, 0
    %v1185 = vxor.u32 %v1179, 2147483648
    %v1186 = vsel %vm1184, %v1171, %v1185
    %vm1187 = vcmp.eq.s32.totalorder %v1182, 2
    %v1188 = vxor.u32 %v1171, 2147483648
    %v1189 = vsel %vm1187, %v1188, %v1179
    %v1190 = vsel %vm1183, %v1186, %v1189
    %v1191 = vsel %vm1180, nan, %v1190
    %v1192 = vand.u32 2147483647, %v880
    %vm1193 = vcmp.le.f32.partialorder %v1192, 0.7853982
    %vm1194 = vcmp.lt.s32.totalorder %v880, 0
    %v1195 = vand.u32 %v880, 2139095040
    %v1196 = vshrl.u32 %v1195, 23
    %v1197 = vsub.s32 %v1196, 127
    %v1198 = vand.u32 2147483647, %v880
    %v1199 = vand.u32 %v1198, 8388607
    %v1200 = vor.u32 %v1199, 8388608
    %v1201 = vsub.s32 0, %v1200
    %v1202 = vadd.s32 %v1197, 1
    %vm1203 = vcmp.gt.s32.totalorder %v1202, 0
    %v1204 = vsel %vm1203, %v1202, 0
    %v1205 = vshrl.u32 %v1204, 5
    %v1206 = vand.u32 %v1204, 31
    %v1207 = vsub.s32 32, %v1206
    %v1208 = vshrl.u32 683565275, %v1207
    %v1209 = vshll.u32 683565275, %v1206
    %v1210 = vshrl.u32 2475754826, %v1207
    %v1211 = vor.u32 %v1209, %v1210
    %v1212 = vshll.u32 2475754826, %v1206
    %v1213 = vshrl.u32 2131351028, %v1207
    %v1214 = vor.u32 %v1212, %v1213
    %v1215 = vshll.u32 2131351028, %v1206
    %v1216 = vshrl.u32 2102212464, %v1207
    %v1217 = vor.u32 %v1215, %v1216
    %v1218 = vshll.u32 2102212464, %v1206
    %v1219 = vshrl.u32 920167782, %v1207
    %v1220 = vor.u32 %v1218, %v1219
    %v1221 = vshll.u32 920167782, %v1206
    %v1222 = vshrl.u32 1326507024, %v1207
    %v1223 = vor.u32 %v1221, %v1222
    %vm1224 = vcmp.lt.s32.totalorder %v1205, 1
    %vm1225 = vcmp.lt.s32.totalorder %v1205, 2
    %vm1226 = vcmp.lt.s32.totalorder %v1205, 3
    %vm1227 = vcmp.lt.s32.totalorder %v1205, 4
    %v1228 = vsel %vm1224, %v1208, %v1211
    %v1229 = vsel %vm1227, %v1217, 2102212464
    %v1230 = vsel %vm1226, %v1214, %v1229
    %v1231 = vsel %vm1225, %v1228, %v1230
    %v1232 = vsel %vm1224, %v1211, %v1214
    %v1233 = vsel %vm1227, %v1220, 920167782
    %v1234 = vsel %vm1226, %v1217, %v1233
    %v1235 = vsel %vm1225, %v1232, %v1234
    %v1236 = vsel %vm1224, %v1214, %v1217
    %v1237 = vsel %vm1227, %v1223, 1326507024
    %v1238 = vsel %vm1226, %v1220, %v1237
    %v1239 = vsel %vm1225, %v1236, %v1238
    %v1240 = vshll.u32 %v1200, 8
    %v1241 = vand.u32 %v1240, 65535
    %v1242 = vshrl.u32 %v1240, 16
    %v1243 = vand.u32 %v1239, 65535
    %v1244 = vshrl.u32 %v1239, 16
    %v1245 = vmul.u32 %v1241, %v1243
    %v1246 = vmul.u32 %v1241, %v1244
    %v1247 = vmul.u32 %v1242, %v1243
    %v1248 = vmul.u32 %v1242, %v1244
    %v1249 = vshll.u32 %v1246, 16
    %v1250 = vshrl.u32 %v1246, 16
    %v1251 = vshll.u32 %v1247, 16
    %v1252 = vshrl.u32 %v1247, 16
    %vm1253 = vc.u32 %v1245, %v1249
    %v1254 = vsel %vm1253, 1, 0
    %v1255 = vadd.s32 %v1245, %v1249
    %v1256 = vadd.s32 %v1248, %v1254
    %vm1257 = vc.u32 %v1255, %v1251
    %v1258 = vsel %vm1257, 1, 0
    %v1259 = vadd.s32 %v1255, %v1251
    %v1260 = vadd.s32 %v1256, %v1258
    %v1261 = vadd.s32 %v1260, %v1250
    %v1262 = vadd.s32 %v1261, %v1252
    %v1263 = vand.u32 %v1240, 65535
    %v1264 = vshrl.u32 %v1240, 16
    %v1265 = vand.u32 %v1235, 65535
    %v1266 = vshrl.u32 %v1235, 16
    %v1267 = vmul.u32 %v1263, %v1265
    %v1268 = vmul.u32 %v1263, %v1266
    %v1269 = vmul.u32 %v1264, %v1265
    %v1270 = vmul.u32 %v1264, %v1266
    %v1271 = vshll.u32 %v1268, 16
    %v1272 = vshrl.u32 %v1268, 16
    %v1273 = vshll.u32 %v1269, 16
    %v1274 = vshrl.u32 %v1269, 16
    %vm1275 = vc.u32 %v1267, %v1271
    %v1276 = vsel %vm1275, 1, 0
    %v1277 = vadd.s32 %v1267, %v1271
    %v1278 = vadd.s32 %v1270, %v1276
    %vm1279 = vc.u32 %v1277, %v1273
    %v1280 = vsel %vm1279, 1, 0
    %v1281 = vadd.s32 %v1277, %v1273
    %v1282 = vadd.s32 %v1278, %v1280
    %v1283 = vadd.s32 %v1282, %v1272
    %v1284 = vadd.s32 %v1283, %v1274
    %v1285 = vmul.u32 %v1240, %v1231
    %v1286 = vadd.s32 %v1262, %v1281
    %vm1287 = vc.u32 %v1262, %v1281
    %v1288 = vadd.s32 %v1284, 1
    %v1289 = vsel %vm1287, %v1288, %v1284
    %v1290 = vadd.s32 %v1285, %v1289
    %v1291 = vadd.s32 %v1290, 536870912
    %v1292 = vshrl.u32 %v1291, 30
    %v1293 = vshll.u32 %v1292, 30
    %v1294 = vsub.s32 %v1290, %v1293
    %vm1295 = vcmp.lt.s32.totalorder %v1294, 0
    %v1296 = vsub.s32 0, %v1294
    %v1297 = vsel %vm1295, %v1296, %v1294
    %v1298 = vclz %v1297
    %v1299 = vsub.s32 %v1298, 2
    %vm1300 = vcmp.gt.s32.totalorder 0, %v1299
    %v1301 = vsel %vm1300, 0, %v1299
    %v1302 = vsub.s32 32, %v1301
    %v1303 = vshll.u32 %v1294, %v1301
    %v1304 = vshrl.u32 %v1286, %v1302
    %v1305 = vor.u32 %v1303, %v1304
    %v1306 = vsub.s32 4294967266, %v1301
    %v1307 = vadd.s32 %v1306, 127
    %v1308 = vshll.u32 %v1307, 23
    %v1309 = vor.u32 4788187, %v1308
    %v1310 = vand.u32 2147483647, %v1309
    %v1312 = vcvt.s32.f32 %v1305
    %v1313 = vmul.f32 %v1312, %v1310
    %v1314 = vxor.u32 %v1313, 2147483648
    %v1315 = vsel %vm1194, %v1314, %v1313
    %v1316 = vsub.s32 4, %v1292
    %v1317 = vsel %vm1194, %v1316, %v1292
    %v1318 = vsel %vm1193, %v880, %v1315
    %v1319 = vsel %vm1193, 0, %v1317
    %v1320 = vmul.f32 %v1318, %v1318
    %v1321 = vmul.f32 %v1320, -0.001358992
    %v1322 = vadd.f32 %v1321, 0.041655596
    %v1323 = vmul.f32 %v1320, %v1322
    %v1324 = vadd.f32 %v1323, -0.4999988
    %v1325 = vmul.f32 %v1320, %v1324
    %v1326 = vadd.f32 1.0, %v1325
    %v1327 = vmul.f32 %v1318, %v1318
    %v1328 = vmul.f32 %v1327, -0.00019511016
    %v1329 = vadd.f32 %v1328, 0.008332121
    %v1330 = vmul.f32 %v1327, %v1329
    %v1331 = vadd.f32 %v1330, -0.16666654
    %v1332 = vmul.f32 %v1327, %v1331
    %v1333 = vadd.f32 %v1332, 1.0
    %v1334 = vmul.f32 %v1333, %v1318
    %vm1335 = vweird.f32 %v880
    %v1336 = vadd.s32 %v1319, 3
    %v1337 = vand.u32 %v1336, 3
    %vm1338 = vcmp.lt.s32.totalorder %v1337, 2
    %vm1339 = vcmp.eq.s32.totalorder %v1337, 0
    %v1340 = vxor.u32 %v1334, 2147483648
    %v1341 = vsel %vm1339, %v1326, %v1340
    %vm1342 = vcmp.eq.s32.totalorder %v1337, 2
    %v1343 = vxor.u32 %v1326, 2147483648
    %v1344 = vsel %vm1342, %v1343, %v1334
    %v1345 = vsel %vm1338, %v1341, %v1344
    %v1346 = vsel %vm1335, nan, %v1345
    %v1347 = vand.u32 2147483647, %v881
    %vm1348 = vcmp.le.f32.partialorder %v1347, 0.7853982
    %vm1349 = vcmp.lt.s32.totalorder %v881, 0
    %v1350 = vand.u32 %v881, 2139095040
    %v1351 = vshrl.u32 %v1350, 23
    %v1352 = vsub.s32 %v1351, 127
    %v1353 = vand.u32 2147483647, %v881
    %v1354 = vand.u32 %v1353, 8388607
    %v1355 = vor.u32 %v1354, 8388608
    %v1356 = vsub.s32 0, %v1355
    %v1357 = vadd.s32 %v1352, 1
    %vm1358 = vcmp.gt.s32.totalorder %v1357, 0
    %v1359 = vsel %vm1358, %v1357, 0
    %v1360 = vshrl.u32 %v1359, 5
    %v1361 = vand.u32 %v1359, 31
    %v1362 = vsub.s32 32, %v1361
    %v1363 = vshrl.u32 683565275, %v1362
    %v1364 = vshll.u32 683565275, %v1361
    %v1365 = vshrl.u32 2475754826, %v1362
    %v1366 = vor.u32 %v1364, %v1365
    %v1367 = vshll.u32 2475754826, %v1361
    %v1368 = vshrl.u32 2131351028, %v1362
    %v1369 = vor.u32 %v1367, %v1368
    %v1370 = vshll.u32 2131351028, %v1361
    %v1371 = vshrl.u32 2102212464, %v1362
    %v1372 = vor.u32 %v1370, %v1371
    %v1373 = vshll.u32 2102212464, %v1361
    %v1374 = vshrl.u32 920167782, %v1362
    %v1375 = vor.u32 %v1373, %v1374
    %v1376 = vshll.u32 920167782, %v1361
    %v1377 = vshrl.u32 1326507024, %v1362
    %v1378 = vor.u32 %v1376, %v1377
    %vm1379 = vcmp.lt.s32.totalorder %v1360, 1
    %vm1380 = vcmp.lt.s32.totalorder %v1360, 2
    %vm1381 = vcmp.lt.s32.totalorder %v1360, 3
    %vm1382 = vcmp.lt.s32.totalorder %v1360, 4
    %v1383 = vsel %vm1379, %v1363, %v1366
    %v1384 = vsel %vm1382, %v1372, 2102212464
    %v1385 = vsel %vm1381, %v1369, %v1384
    %v1386 = vsel %vm1380, %v1383, %v1385
    %v1387 = vsel %vm1379, %v1366, %v1369
    %v1388 = vsel %vm1382, %v1375, 920167782
    %v1389 = vsel %vm1381, %v1372, %v1388
    %v1390 = vsel %vm1380, %v1387, %v1389
    %v1391 = vsel %vm1379, %v1369, %v1372
    %v1392 = vsel %vm1382, %v1378, 1326507024
    %v1393 = vsel %vm1381, %v1375, %v1392
    %v1394 = vsel %vm1380, %v1391, %v1393
    %v1395 = vshll.u32 %v1355, 8
    %v1396 = vand.u32 %v1395, 65535
    %v1397 = vshrl.u32 %v1395, 16
    %v1398 = vand.u32 %v1394, 65535
    %v1399 = vshrl.u32 %v1394, 16
    %v1400 = vmul.u32 %v1396, %v1398
    %v1401 = vmul.u32 %v1396, %v1399
    %v1402 = vmul.u32 %v1397, %v1398
    %v1403 = vmul.u32 %v1397, %v1399
    %v1404 = vshll.u32 %v1401, 16
    %v1405 = vshrl.u32 %v1401, 16
    %v1406 = vshll.u32 %v1402, 16
    %v1407 = vshrl.u32 %v1402, 16
    %vm1408 = vc.u32 %v1400, %v1404
    %v1409 = vsel %vm1408, 1, 0
    %v1410 = vadd.s32 %v1400, %v1404
    %v1411 = vadd.s32 %v1403, %v1409
    %vm1412 = vc.u32 %v1410, %v1406
    %v1413 = vsel %vm1412, 1, 0
    %v1414 = vadd.s32 %v1410, %v1406
    %v1415 = vadd.s32 %v1411, %v1413
    %v1416 = vadd.s32 %v1415, %v1405
    %v1417 = vadd.s32 %v1416, %v1407
    %v1418 = vand.u32 %v1395, 65535
    %v1419 = vshrl.u32 %v1395, 16
    %v1420 = vand.u32 %v1390, 65535
    %v1421 = vshrl.u32 %v1390, 16
    %v1422 = vmul.u32 %v1418, %v1420
    %v1423 = vmul.u32 %v1418, %v1421
    %v1424 = vmul.u32 %v1419, %v1420
    %v1425 = vmul.u32 %v1419, %v1421
    %v1426 = vshll.u32 %v1423, 16
    %v1427 = vshrl.u32 %v1423, 16
    %v1428 = vshll.u32 %v1424, 16
    %v1429 = vshrl.u32 %v1424, 16
    %vm1430 = vc.u32 %v1422, %v1426
    %v1431 = vsel %vm1430, 1, 0
    %v1432 = vadd.s32 %v1422, %v1426
    %v1433 = vadd.s32 %v1425, %v1431
    %vm1434 = vc.u32 %v1432, %v1428
    %v1435 = vsel %vm1434, 1, 0
    %v1436 = vadd.s32 %v1432, %v1428
    %v1437 = vadd.s32 %v1433, %v1435
    %v1438 = vadd.s32 %v1437, %v1427
    %v1439 = vadd.s32 %v1438, %v1429
    %v1440 = vmul.u32 %v1395, %v1386
    %v1441 = vadd.s32 %v1417, %v1436
    %vm1442 = vc.u32 %v1417, %v1436
    %v1443 = vadd.s32 %v1439, 1
    %v1444 = vsel %vm1442, %v1443, %v1439
    %v1445 = vadd.s32 %v1440, %v1444
    %v1446 = vadd.s32 %v1445, 536870912
    %v1447 = vshrl.u32 %v1446, 30
    %v1448 = vshll.u32 %v1447, 30
    %v1449 = vsub.s32 %v1445, %v1448
    %vm1450 = vcmp.lt.s32.totalorder %v1449, 0
    %v1451 = vsub.s32 0, %v1449
    %v1452 = vsel %vm1450, %v1451, %v1449
    %v1453 = vclz %v1452
    %v1454 = vsub.s32 %v1453, 2
    %vm1455 = vcmp.gt.s32.totalorder 0, %v1454
    %v1456 = vsel %vm1455, 0, %v1454
    %v1457 = vsub.s32 32, %v1456
    %v1458 = vshll.u32 %v1449, %v1456
    %v1459 = vshrl.u32 %v1441, %v1457
    %v1460 = vor.u32 %v1458, %v1459
    %v1461 = vsub.s32 4294967266, %v1456
    %v1462 = vadd.s32 %v1461, 127
    %v1463 = vshll.u32 %v1462, 23
    %v1464 = vor.u32 4788187, %v1463
    %v1465 = vand.u32 2147483647, %v1464
    %v1467 = vcvt.s32.f32 %v1460
    %v1468 = vmul.f32 %v1467, %v1465
    %v1469 = vxor.u32 %v1468, 2147483648
    %v1470 = vsel %vm1349, %v1469, %v1468
    %v1471 = vsub.s32 4, %v1447
    %v1472 = vsel %vm1349, %v1471, %v1447
    %v1473 = vsel %vm1348, %v881, %v1470
    %v1474 = vsel %vm1348, 0, %v1472
    %v1475 = vmul.f32 %v1473, %v1473
    %v1476 = vmul.f32 %v1475, -0.001358992
    %v1477 = vadd.f32 %v1476, 0.041655596
    %v1478 = vmul.f32 %v1475, %v1477
    %v1479 = vadd.f32 %v1478, -0.4999988
    %v1480 = vmul.f32 %v1475, %v1479
    %v1481 = vadd.f32 1.0, %v1480
    %v1482 = vmul.f32 %v1473, %v1473
    %v1483 = vmul.f32 %v1482, -0.00019511016
    %v1484 = vadd.f32 %v1483, 0.008332121
    %v1485 = vmul.f32 %v1482, %v1484
    %v1486 = vadd.f32 %v1485, -0.16666654
    %v1487 = vmul.f32 %v1482, %v1486
    %v1488 = vadd.f32 %v1487, 1.0
    %v1489 = vmul.f32 %v1488, %v1473
    %vm1490 = vweird.f32 %v881
    %v1491 = vadd.s32 %v1474, 3
    %v1492 = vand.u32 %v1491, 3
    %vm1493 = vcmp.lt.s32.totalorder %v1492, 2
    %vm1494 = vcmp.eq.s32.totalorder %v1492, 0
    %v1495 = vxor.u32 %v1489, 2147483648
    %v1496 = vsel %vm1494, %v1481, %v1495
    %vm1497 = vcmp.eq.s32.totalorder %v1492, 2
    %v1498 = vxor.u32 %v1481, 2147483648
    %v1499 = vsel %vm1497, %v1498, %v1489
    %v1500 = vsel %vm1493, %v1496, %v1499
    %v1501 = vsel %vm1490, nan, %v1500
    %s1502 = scalar_lea.vmem %s1, 2
    %v1503 = vld [vmem:[%s1502] ss:$4 sm:$0x3]
    %s1504 = scalar_lea.vmem %s2, 2
    %v1505 = vld [vmem:[%s1504] ss:$4 sm:$0x3]
    %v1507 = vperm.slane %v1503, 0
    %v1508 = vperm.slane %v1503, 1
    %v1511 = vmul.f32 %v1036, %v1507
    %v1512 = vmul.f32 %v1191, %v1508
    %v1513 = vmul.f32 %v1346, %v1507
    %v1514 = vmul.f32 %v1501, %v1508
    %1515 = vrot.lane.b32.xlu0 %v1511, 1
    %v1516 = vpop.permute.xlu0 %1515
    %1517 = vrot.lane.b32.xlu0 %v1513, 1
    %v1518 = vpop.permute.xlu0 %1517
    %1519 = vrot.lane.b32.xlu0 %v1512, 1
    %v1520 = vpop.permute.xlu0 %1519
    %1521 = vrot.lane.b32.xlu0 %v1514, 1
    %v1522 = vpop.permute.xlu0 %1521
    %v1523 = vsel %vm50, %v1516, %v1520
    %v1524 = vsel %vm50, %v1518, %v1522
    %v1525 = vsel %vm50, %v1520, %v1516
    %v1526 = vsel %vm50, %v1522, %v1518
    %v1527 = vmul.f32 %v1525, %v60
    %v1528 = vmul.f32 %v1523, %v61
    %v1529 = vmul.f32 %v1526, %v60
    %v1530 = vmul.f32 %v1524, %v61
    %1531 = vrot.lane.b32.xlu0 %v1511, 127
    %v1532 = vpop.permute.xlu0 %1531
    %1533 = vrot.lane.b32.xlu0 %v1513, 127
    %v1534 = vpop.permute.xlu0 %1533
    %1535 = vrot.lane.b32.xlu0 %v1512, 127
    %v1536 = vpop.permute.xlu0 %1535
    %1537 = vrot.lane.b32.xlu0 %v1514, 127
    %v1538 = vpop.permute.xlu0 %1537
    %v1539 = vsel %vm74, %v1532, %v1536
    %v1540 = vsel %vm74, %v1534, %v1538
    %v1541 = vsel %vm74, %v1536, %v1532
    %v1542 = vsel %vm74, %v1538, %v1534
    %v1543 = vmul.f32 %v1539, %v83
    %v1544 = vmul.f32 %v1541, %v84
    %v1545 = vmul.f32 %v1540, %v83
    %v1546 = vmul.f32 %v1542, %v84
    %v1547 = vadd.f32 %v1527, %v1511
    %v1548 = vadd.f32 %v1528, %v1512
    %v1549 = vadd.f32 %v1529, %v1513
    %v1550 = vadd.f32 %v1530, %v1514
    %v1551 = vadd.f32 %v1547, %v1543
    %v1552 = vadd.f32 %v1548, %v1544
    %v1553 = vadd.f32 %v1549, %v1545
    %v1554 = vadd.f32 %v1550, %v1546
    %1555 = vrot.lane.b32.xlu0 %v1551, 16
    %v1556 = vpop.permute.xlu0 %1555
    %1557 = vrot.lane.b32.xlu0 %v1553, 16
    %v1558 = vpop.permute.xlu0 %1557
    %1559 = vrot.lane.b32.xlu0 %v1552, 16
    %v1560 = vpop.permute.xlu0 %1559
    %1561 = vrot.lane.b32.xlu0 %v1554, 16
    %v1562 = vpop.permute.xlu0 %1561
    %v1563 = vsel %vm105, %v1556, %v1560
    %v1564 = vsel %vm105, %v1558, %v1562
    %v1565 = vsel %vm105, %v1560, %v1556
    %v1566 = vsel %vm105, %v1562, %v1558
    %v1567 = vmul.f32 %v1565, %v114
    %v1568 = vmul.f32 %v1563, %v115
    %v1569 = vmul.f32 %v1566, %v114
    %v1570 = vmul.f32 %v1564, %v115
    %1571 = vrot.lane.b32.xlu0 %v1551, 112
    %v1572 = vpop.permute.xlu0 %1571
    %1573 = vrot.lane.b32.xlu0 %v1553, 112
    %v1574 = vpop.permute.xlu0 %1573
    %1575 = vrot.lane.b32.xlu0 %v1552, 112
    %v1576 = vpop.permute.xlu0 %1575
    %1577 = vrot.lane.b32.xlu0 %v1554, 112
    %v1578 = vpop.permute.xlu0 %1577
    %v1579 = vsel %vm128, %v1572, %v1576
    %v1580 = vsel %vm128, %v1574, %v1578
    %v1581 = vsel %vm128, %v1576, %v1572
    %v1582 = vsel %vm128, %v1578, %v1574
    %v1583 = vmul.f32 %v1579, %v137
    %v1584 = vmul.f32 %v1581, %v138
    %v1585 = vmul.f32 %v1580, %v137
    %v1586 = vmul.f32 %v1582, %v138
    %v1587 = vadd.f32 %v1567, %v1551
    %v1588 = vadd.f32 %v1568, %v1552
    %v1589 = vadd.f32 %v1569, %v1553
    %v1590 = vadd.f32 %v1570, %v1554
    %v1591 = vadd.f32 %v1587, %v1583
    %v1592 = vadd.f32 %v1588, %v1584
    %v1593 = vadd.f32 %v1589, %v1585
    %v1594 = vadd.f32 %v1590, %v1586
    %v1596 = vperm.slane %v1505, 0
    %v1597 = vperm.slane %v1505, 1
    %v1600 = vadd.f32 %v1591, %v1596
    %v1601 = vadd.f32 %v1592, %v1597
    %v1602 = vadd.f32 %v1593, %v1596
    %v1603 = vadd.f32 %v1594, %v1597
    %v1604 = vand.u32 2147483647, %v1600
    %vm1605 = vcmp.le.f32.partialorder %v1604, 0.7853982
    %vm1606 = vcmp.lt.s32.totalorder %v1600, 0
    %v1607 = vand.u32 %v1600, 2139095040
    %v1608 = vshrl.u32 %v1607, 23
    %v1609 = vsub.s32 %v1608, 127
    %v1610 = vand.u32 2147483647, %v1600
    %v1611 = vand.u32 %v1610, 8388607
    %v1612 = vor.u32 %v1611, 8388608
    %v1613 = vsub.s32 0, %v1612
    %v1614 = vadd.s32 %v1609, 1
    %vm1615 = vcmp.gt.s32.totalorder %v1614, 0
    %v1616 = vsel %vm1615, %v1614, 0
    %v1617 = vshrl.u32 %v1616, 5
    %v1618 = vand.u32 %v1616, 31
    %v1619 = vsub.s32 32, %v1618
    %v1620 = vshrl.u32 683565275, %v1619
    %v1621 = vshll.u32 683565275, %v1618
    %v1622 = vshrl.u32 2475754826, %v1619
    %v1623 = vor.u32 %v1621, %v1622
    %v1624 = vshll.u32 2475754826, %v1618
    %v1625 = vshrl.u32 2131351028, %v1619
    %v1626 = vor.u32 %v1624, %v1625
    %v1627 = vshll.u32 2131351028, %v1618
    %v1628 = vshrl.u32 2102212464, %v1619
    %v1629 = vor.u32 %v1627, %v1628
    %v1630 = vshll.u32 2102212464, %v1618
    %v1631 = vshrl.u32 920167782, %v1619
    %v1632 = vor.u32 %v1630, %v1631
    %v1633 = vshll.u32 920167782, %v1618
    %v1634 = vshrl.u32 1326507024, %v1619
    %v1635 = vor.u32 %v1633, %v1634
    %vm1636 = vcmp.lt.s32.totalorder %v1617, 1
    %vm1637 = vcmp.lt.s32.totalorder %v1617, 2
    %vm1638 = vcmp.lt.s32.totalorder %v1617, 3
    %vm1639 = vcmp.lt.s32.totalorder %v1617, 4
    %v1640 = vsel %vm1636, %v1620, %v1623
    %v1641 = vsel %vm1639, %v1629, 2102212464
    %v1642 = vsel %vm1638, %v1626, %v1641
    %v1643 = vsel %vm1637, %v1640, %v1642
    %v1644 = vsel %vm1636, %v1623, %v1626
    %v1645 = vsel %vm1639, %v1632, 920167782
    %v1646 = vsel %vm1638, %v1629, %v1645
    %v1647 = vsel %vm1637, %v1644, %v1646
    %v1648 = vsel %vm1636, %v1626, %v1629
    %v1649 = vsel %vm1639, %v1635, 1326507024
    %v1650 = vsel %vm1638, %v1632, %v1649
    %v1651 = vsel %vm1637, %v1648, %v1650
    %v1652 = vshll.u32 %v1612, 8
    %v1653 = vand.u32 %v1652, 65535
    %v1654 = vshrl.u32 %v1652, 16
    %v1655 = vand.u32 %v1651, 65535
    %v1656 = vshrl.u32 %v1651, 16
    %v1657 = vmul.u32 %v1653, %v1655
    %v1658 = vmul.u32 %v1653, %v1656
    %v1659 = vmul.u32 %v1654, %v1655
    %v1660 = vmul.u32 %v1654, %v1656
    %v1661 = vshll.u32 %v1658, 16
    %v1662 = vshrl.u32 %v1658, 16
    %v1663 = vshll.u32 %v1659, 16
    %v1664 = vshrl.u32 %v1659, 16
    %vm1665 = vc.u32 %v1657, %v1661
    %v1666 = vsel %vm1665, 1, 0
    %v1667 = vadd.s32 %v1657, %v1661
    %v1668 = vadd.s32 %v1660, %v1666
    %vm1669 = vc.u32 %v1667, %v1663
    %v1670 = vsel %vm1669, 1, 0
    %v1671 = vadd.s32 %v1667, %v1663
    %v1672 = vadd.s32 %v1668, %v1670
    %v1673 = vadd.s32 %v1672, %v1662
    %v1674 = vadd.s32 %v1673, %v1664
    %v1675 = vand.u32 %v1652, 65535
    %v1676 = vshrl.u32 %v1652, 16
    %v1677 = vand.u32 %v1647, 65535
    %v1678 = vshrl.u32 %v1647, 16
    %v1679 = vmul.u32 %v1675, %v1677
    %v1680 = vmul.u32 %v1675, %v1678
    %v1681 = vmul.u32 %v1676, %v1677
    %v1682 = vmul.u32 %v1676, %v1678
    %v1683 = vshll.u32 %v1680, 16
    %v1684 = vshrl.u32 %v1680, 16
    %v1685 = vshll.u32 %v1681, 16
    %v1686 = vshrl.u32 %v1681, 16
    %vm1687 = vc.u32 %v1679, %v1683
    %v1688 = vsel %vm1687, 1, 0
    %v1689 = vadd.s32 %v1679, %v1683
    %v1690 = vadd.s32 %v1682, %v1688
    %vm1691 = vc.u32 %v1689, %v1685
    %v1692 = vsel %vm1691, 1, 0
    %v1693 = vadd.s32 %v1689, %v1685
    %v1694 = vadd.s32 %v1690, %v1692
    %v1695 = vadd.s32 %v1694, %v1684
    %v1696 = vadd.s32 %v1695, %v1686
    %v1697 = vmul.u32 %v1652, %v1643
    %v1698 = vadd.s32 %v1674, %v1693
    %vm1699 = vc.u32 %v1674, %v1693
    %v1700 = vadd.s32 %v1696, 1
    %v1701 = vsel %vm1699, %v1700, %v1696
    %v1702 = vadd.s32 %v1697, %v1701
    %v1703 = vadd.s32 %v1702, 536870912
    %v1704 = vshrl.u32 %v1703, 30
    %v1705 = vshll.u32 %v1704, 30
    %v1706 = vsub.s32 %v1702, %v1705
    %vm1707 = vcmp.lt.s32.totalorder %v1706, 0
    %v1708 = vsub.s32 0, %v1706
    %v1709 = vsel %vm1707, %v1708, %v1706
    %v1710 = vclz %v1709
    %v1711 = vsub.s32 %v1710, 2
    %vm1712 = vcmp.gt.s32.totalorder 0, %v1711
    %v1713 = vsel %vm1712, 0, %v1711
    %v1714 = vsub.s32 32, %v1713
    %v1715 = vshll.u32 %v1706, %v1713
    %v1716 = vshrl.u32 %v1698, %v1714
    %v1717 = vor.u32 %v1715, %v1716
    %v1718 = vsub.s32 4294967266, %v1713
    %v1719 = vadd.s32 %v1718, 127
    %v1720 = vshll.u32 %v1719, 23
    %v1721 = vor.u32 4788187, %v1720
    %v1722 = vand.u32 2147483647, %v1721
    %v1724 = vcvt.s32.f32 %v1717
    %v1725 = vmul.f32 %v1724, %v1722
    %v1726 = vxor.u32 %v1725, 2147483648
    %v1727 = vsel %vm1606, %v1726, %v1725
    %v1728 = vsub.s32 4, %v1704
    %v1729 = vsel %vm1606, %v1728, %v1704
    %v1730 = vsel %vm1605, %v1600, %v1727
    %v1731 = vsel %vm1605, 0, %v1729
    %v1732 = vmul.f32 %v1730, %v1730
    %v1733 = vmul.f32 %v1732, -0.001358992
    %v1734 = vadd.f32 %v1733, 0.041655596
    %v1735 = vmul.f32 %v1732, %v1734
    %v1736 = vadd.f32 %v1735, -0.4999988
    %v1737 = vmul.f32 %v1732, %v1736
    %v1738 = vadd.f32 1.0, %v1737
    %v1739 = vmul.f32 %v1730, %v1730
    %v1740 = vmul.f32 %v1739, -0.00019511016
    %v1741 = vadd.f32 %v1740, 0.008332121
    %v1742 = vmul.f32 %v1739, %v1741
    %v1743 = vadd.f32 %v1742, -0.16666654
    %v1744 = vmul.f32 %v1739, %v1743
    %v1745 = vadd.f32 %v1744, 1.0
    %v1746 = vmul.f32 %v1745, %v1730
    %vm1747 = vweird.f32 %v1600
    %v1748 = vadd.s32 %v1731, 3
    %v1749 = vand.u32 %v1748, 3
    %vm1750 = vcmp.lt.s32.totalorder %v1749, 2
    %vm1751 = vcmp.eq.s32.totalorder %v1749, 0
    %v1752 = vxor.u32 %v1746, 2147483648
    %v1753 = vsel %vm1751, %v1738, %v1752
    %vm1754 = vcmp.eq.s32.totalorder %v1749, 2
    %v1755 = vxor.u32 %v1738, 2147483648
    %v1756 = vsel %vm1754, %v1755, %v1746
    %v1757 = vsel %vm1750, %v1753, %v1756
    %v1758 = vsel %vm1747, nan, %v1757
    %v1759 = vand.u32 2147483647, %v1601
    %vm1760 = vcmp.le.f32.partialorder %v1759, 0.7853982
    %vm1761 = vcmp.lt.s32.totalorder %v1601, 0
    %v1762 = vand.u32 %v1601, 2139095040
    %v1763 = vshrl.u32 %v1762, 23
    %v1764 = vsub.s32 %v1763, 127
    %v1765 = vand.u32 2147483647, %v1601
    %v1766 = vand.u32 %v1765, 8388607
    %v1767 = vor.u32 %v1766, 8388608
    %v1768 = vsub.s32 0, %v1767
    %v1769 = vadd.s32 %v1764, 1
    %vm1770 = vcmp.gt.s32.totalorder %v1769, 0
    %v1771 = vsel %vm1770, %v1769, 0
    %v1772 = vshrl.u32 %v1771, 5
    %v1773 = vand.u32 %v1771, 31
    %v1774 = vsub.s32 32, %v1773
    %v1775 = vshrl.u32 683565275, %v1774
    %v1776 = vshll.u32 683565275, %v1773
    %v1777 = vshrl.u32 2475754826, %v1774
    %v1778 = vor.u32 %v1776, %v1777
    %v1779 = vshll.u32 2475754826, %v1773
    %v1780 = vshrl.u32 2131351028, %v1774
    %v1781 = vor.u32 %v1779, %v1780
    %v1782 = vshll.u32 2131351028, %v1773
    %v1783 = vshrl.u32 2102212464, %v1774
    %v1784 = vor.u32 %v1782, %v1783
    %v1785 = vshll.u32 2102212464, %v1773
    %v1786 = vshrl.u32 920167782, %v1774
    %v1787 = vor.u32 %v1785, %v1786
    %v1788 = vshll.u32 920167782, %v1773
    %v1789 = vshrl.u32 1326507024, %v1774
    %v1790 = vor.u32 %v1788, %v1789
    %vm1791 = vcmp.lt.s32.totalorder %v1772, 1
    %vm1792 = vcmp.lt.s32.totalorder %v1772, 2
    %vm1793 = vcmp.lt.s32.totalorder %v1772, 3
    %vm1794 = vcmp.lt.s32.totalorder %v1772, 4
    %v1795 = vsel %vm1791, %v1775, %v1778
    %v1796 = vsel %vm1794, %v1784, 2102212464
    %v1797 = vsel %vm1793, %v1781, %v1796
    %v1798 = vsel %vm1792, %v1795, %v1797
    %v1799 = vsel %vm1791, %v1778, %v1781
    %v1800 = vsel %vm1794, %v1787, 920167782
    %v1801 = vsel %vm1793, %v1784, %v1800
    %v1802 = vsel %vm1792, %v1799, %v1801
    %v1803 = vsel %vm1791, %v1781, %v1784
    %v1804 = vsel %vm1794, %v1790, 1326507024
    %v1805 = vsel %vm1793, %v1787, %v1804
    %v1806 = vsel %vm1792, %v1803, %v1805
    %v1807 = vshll.u32 %v1767, 8
    %v1808 = vand.u32 %v1807, 65535
    %v1809 = vshrl.u32 %v1807, 16
    %v1810 = vand.u32 %v1806, 65535
    %v1811 = vshrl.u32 %v1806, 16
    %v1812 = vmul.u32 %v1808, %v1810
    %v1813 = vmul.u32 %v1808, %v1811
    %v1814 = vmul.u32 %v1809, %v1810
    %v1815 = vmul.u32 %v1809, %v1811
    %v1816 = vshll.u32 %v1813, 16
    %v1817 = vshrl.u32 %v1813, 16
    %v1818 = vshll.u32 %v1814, 16
    %v1819 = vshrl.u32 %v1814, 16
    %vm1820 = vc.u32 %v1812, %v1816
    %v1821 = vsel %vm1820, 1, 0
    %v1822 = vadd.s32 %v1812, %v1816
    %v1823 = vadd.s32 %v1815, %v1821
    %vm1824 = vc.u32 %v1822, %v1818
    %v1825 = vsel %vm1824, 1, 0
    %v1826 = vadd.s32 %v1822, %v1818
    %v1827 = vadd.s32 %v1823, %v1825
    %v1828 = vadd.s32 %v1827, %v1817
    %v1829 = vadd.s32 %v1828, %v1819
    %v1830 = vand.u32 %v1807, 65535
    %v1831 = vshrl.u32 %v1807, 16
    %v1832 = vand.u32 %v1802, 65535
    %v1833 = vshrl.u32 %v1802, 16
    %v1834 = vmul.u32 %v1830, %v1832
    %v1835 = vmul.u32 %v1830, %v1833
    %v1836 = vmul.u32 %v1831, %v1832
    %v1837 = vmul.u32 %v1831, %v1833
    %v1838 = vshll.u32 %v1835, 16
    %v1839 = vshrl.u32 %v1835, 16
    %v1840 = vshll.u32 %v1836, 16
    %v1841 = vshrl.u32 %v1836, 16
    %vm1842 = vc.u32 %v1834, %v1838
    %v1843 = vsel %vm1842, 1, 0
    %v1844 = vadd.s32 %v1834, %v1838
    %v1845 = vadd.s32 %v1837, %v1843
    %vm1846 = vc.u32 %v1844, %v1840
    %v1847 = vsel %vm1846, 1, 0
    %v1848 = vadd.s32 %v1844, %v1840
    %v1849 = vadd.s32 %v1845, %v1847
    %v1850 = vadd.s32 %v1849, %v1839
    %v1851 = vadd.s32 %v1850, %v1841
    %v1852 = vmul.u32 %v1807, %v1798
    %v1853 = vadd.s32 %v1829, %v1848
    %vm1854 = vc.u32 %v1829, %v1848
    %v1855 = vadd.s32 %v1851, 1
    %v1856 = vsel %vm1854, %v1855, %v1851
    %v1857 = vadd.s32 %v1852, %v1856
    %v1858 = vadd.s32 %v1857, 536870912
    %v1859 = vshrl.u32 %v1858, 30
    %v1860 = vshll.u32 %v1859, 30
    %v1861 = vsub.s32 %v1857, %v1860
    %vm1862 = vcmp.lt.s32.totalorder %v1861, 0
    %v1863 = vsub.s32 0, %v1861
    %v1864 = vsel %vm1862, %v1863, %v1861
    %v1865 = vclz %v1864
    %v1866 = vsub.s32 %v1865, 2
    %vm1867 = vcmp.gt.s32.totalorder 0, %v1866
    %v1868 = vsel %vm1867, 0, %v1866
    %v1869 = vsub.s32 32, %v1868
    %v1870 = vshll.u32 %v1861, %v1868
    %v1871 = vshrl.u32 %v1853, %v1869
    %v1872 = vor.u32 %v1870, %v1871
    %v1873 = vsub.s32 4294967266, %v1868
    %v1874 = vadd.s32 %v1873, 127
    %v1875 = vshll.u32 %v1874, 23
    %v1876 = vor.u32 4788187, %v1875
    %v1877 = vand.u32 2147483647, %v1876
    %v1879 = vcvt.s32.f32 %v1872
    %v1880 = vmul.f32 %v1879, %v1877
    %v1881 = vxor.u32 %v1880, 2147483648
    %v1882 = vsel %vm1761, %v1881, %v1880
    %v1883 = vsub.s32 4, %v1859
    %v1884 = vsel %vm1761, %v1883, %v1859
    %v1885 = vsel %vm1760, %v1601, %v1882
    %v1886 = vsel %vm1760, 0, %v1884
    %v1887 = vmul.f32 %v1885, %v1885
    %v1888 = vmul.f32 %v1887, -0.001358992
    %v1889 = vadd.f32 %v1888, 0.041655596
    %v1890 = vmul.f32 %v1887, %v1889
    %v1891 = vadd.f32 %v1890, -0.4999988
    %v1892 = vmul.f32 %v1887, %v1891
    %v1893 = vadd.f32 1.0, %v1892
    %v1894 = vmul.f32 %v1885, %v1885
    %v1895 = vmul.f32 %v1894, -0.00019511016
    %v1896 = vadd.f32 %v1895, 0.008332121
    %v1897 = vmul.f32 %v1894, %v1896
    %v1898 = vadd.f32 %v1897, -0.16666654
    %v1899 = vmul.f32 %v1894, %v1898
    %v1900 = vadd.f32 %v1899, 1.0
    %v1901 = vmul.f32 %v1900, %v1885
    %vm1902 = vweird.f32 %v1601
    %v1903 = vadd.s32 %v1886, 3
    %v1904 = vand.u32 %v1903, 3
    %vm1905 = vcmp.lt.s32.totalorder %v1904, 2
    %vm1906 = vcmp.eq.s32.totalorder %v1904, 0
    %v1907 = vxor.u32 %v1901, 2147483648
    %v1908 = vsel %vm1906, %v1893, %v1907
    %vm1909 = vcmp.eq.s32.totalorder %v1904, 2
    %v1910 = vxor.u32 %v1893, 2147483648
    %v1911 = vsel %vm1909, %v1910, %v1901
    %v1912 = vsel %vm1905, %v1908, %v1911
    %v1913 = vsel %vm1902, nan, %v1912
    %v1914 = vand.u32 2147483647, %v1602
    %vm1915 = vcmp.le.f32.partialorder %v1914, 0.7853982
    %vm1916 = vcmp.lt.s32.totalorder %v1602, 0
    %v1917 = vand.u32 %v1602, 2139095040
    %v1918 = vshrl.u32 %v1917, 23
    %v1919 = vsub.s32 %v1918, 127
    %v1920 = vand.u32 2147483647, %v1602
    %v1921 = vand.u32 %v1920, 8388607
    %v1922 = vor.u32 %v1921, 8388608
    %v1923 = vsub.s32 0, %v1922
    %v1924 = vadd.s32 %v1919, 1
    %vm1925 = vcmp.gt.s32.totalorder %v1924, 0
    %v1926 = vsel %vm1925, %v1924, 0
    %v1927 = vshrl.u32 %v1926, 5
    %v1928 = vand.u32 %v1926, 31
    %v1929 = vsub.s32 32, %v1928
    %v1930 = vshrl.u32 683565275, %v1929
    %v1931 = vshll.u32 683565275, %v1928
    %v1932 = vshrl.u32 2475754826, %v1929
    %v1933 = vor.u32 %v1931, %v1932
    %v1934 = vshll.u32 2475754826, %v1928
    %v1935 = vshrl.u32 2131351028, %v1929
    %v1936 = vor.u32 %v1934, %v1935
    %v1937 = vshll.u32 2131351028, %v1928
    %v1938 = vshrl.u32 2102212464, %v1929
    %v1939 = vor.u32 %v1937, %v1938
    %v1940 = vshll.u32 2102212464, %v1928
    %v1941 = vshrl.u32 920167782, %v1929
    %v1942 = vor.u32 %v1940, %v1941
    %v1943 = vshll.u32 920167782, %v1928
    %v1944 = vshrl.u32 1326507024, %v1929
    %v1945 = vor.u32 %v1943, %v1944
    %vm1946 = vcmp.lt.s32.totalorder %v1927, 1
    %vm1947 = vcmp.lt.s32.totalorder %v1927, 2
    %vm1948 = vcmp.lt.s32.totalorder %v1927, 3
    %vm1949 = vcmp.lt.s32.totalorder %v1927, 4
    %v1950 = vsel %vm1946, %v1930, %v1933
    %v1951 = vsel %vm1949, %v1939, 2102212464
    %v1952 = vsel %vm1948, %v1936, %v1951
    %v1953 = vsel %vm1947, %v1950, %v1952
    %v1954 = vsel %vm1946, %v1933, %v1936
    %v1955 = vsel %vm1949, %v1942, 920167782
    %v1956 = vsel %vm1948, %v1939, %v1955
    %v1957 = vsel %vm1947, %v1954, %v1956
    %v1958 = vsel %vm1946, %v1936, %v1939
    %v1959 = vsel %vm1949, %v1945, 1326507024
    %v1960 = vsel %vm1948, %v1942, %v1959
    %v1961 = vsel %vm1947, %v1958, %v1960
    %v1962 = vshll.u32 %v1922, 8
    %v1963 = vand.u32 %v1962, 65535
    %v1964 = vshrl.u32 %v1962, 16
    %v1965 = vand.u32 %v1961, 65535
    %v1966 = vshrl.u32 %v1961, 16
    %v1967 = vmul.u32 %v1963, %v1965
    %v1968 = vmul.u32 %v1963, %v1966
    %v1969 = vmul.u32 %v1964, %v1965
    %v1970 = vmul.u32 %v1964, %v1966
    %v1971 = vshll.u32 %v1968, 16
    %v1972 = vshrl.u32 %v1968, 16
    %v1973 = vshll.u32 %v1969, 16
    %v1974 = vshrl.u32 %v1969, 16
    %vm1975 = vc.u32 %v1967, %v1971
    %v1976 = vsel %vm1975, 1, 0
    %v1977 = vadd.s32 %v1967, %v1971
    %v1978 = vadd.s32 %v1970, %v1976
    %vm1979 = vc.u32 %v1977, %v1973
    %v1980 = vsel %vm1979, 1, 0
    %v1981 = vadd.s32 %v1977, %v1973
    %v1982 = vadd.s32 %v1978, %v1980
    %v1983 = vadd.s32 %v1982, %v1972
    %v1984 = vadd.s32 %v1983, %v1974
    %v1985 = vand.u32 %v1962, 65535
    %v1986 = vshrl.u32 %v1962, 16
    %v1987 = vand.u32 %v1957, 65535
    %v1988 = vshrl.u32 %v1957, 16
    %v1989 = vmul.u32 %v1985, %v1987
    %v1990 = vmul.u32 %v1985, %v1988
    %v1991 = vmul.u32 %v1986, %v1987
    %v1992 = vmul.u32 %v1986, %v1988
    %v1993 = vshll.u32 %v1990, 16
    %v1994 = vshrl.u32 %v1990, 16
    %v1995 = vshll.u32 %v1991, 16
    %v1996 = vshrl.u32 %v1991, 16
    %vm1997 = vc.u32 %v1989, %v1993
    %v1998 = vsel %vm1997, 1, 0
    %v1999 = vadd.s32 %v1989, %v1993
    %v2000 = vadd.s32 %v1992, %v1998
    %vm2001 = vc.u32 %v1999, %v1995
    %v2002 = vsel %vm2001, 1, 0
    %v2003 = vadd.s32 %v1999, %v1995
    %v2004 = vadd.s32 %v2000, %v2002
    %v2005 = vadd.s32 %v2004, %v1994
    %v2006 = vadd.s32 %v2005, %v1996
    %v2007 = vmul.u32 %v1962, %v1953
    %v2008 = vadd.s32 %v1984, %v2003
    %vm2009 = vc.u32 %v1984, %v2003
    %v2010 = vadd.s32 %v2006, 1
    %v2011 = vsel %vm2009, %v2010, %v2006
    %v2012 = vadd.s32 %v2007, %v2011
    %v2013 = vadd.s32 %v2012, 536870912
    %v2014 = vshrl.u32 %v2013, 30
    %v2015 = vshll.u32 %v2014, 30
    %v2016 = vsub.s32 %v2012, %v2015
    %vm2017 = vcmp.lt.s32.totalorder %v2016, 0
    %v2018 = vsub.s32 0, %v2016
    %v2019 = vsel %vm2017, %v2018, %v2016
    %v2020 = vclz %v2019
    %v2021 = vsub.s32 %v2020, 2
    %vm2022 = vcmp.gt.s32.totalorder 0, %v2021
    %v2023 = vsel %vm2022, 0, %v2021
    %v2024 = vsub.s32 32, %v2023
    %v2025 = vshll.u32 %v2016, %v2023
    %v2026 = vshrl.u32 %v2008, %v2024
    %v2027 = vor.u32 %v2025, %v2026
    %v2028 = vsub.s32 4294967266, %v2023
    %v2029 = vadd.s32 %v2028, 127
    %v2030 = vshll.u32 %v2029, 23
    %v2031 = vor.u32 4788187, %v2030
    %v2032 = vand.u32 2147483647, %v2031
    %v2034 = vcvt.s32.f32 %v2027
    %v2035 = vmul.f32 %v2034, %v2032
    %v2036 = vxor.u32 %v2035, 2147483648
    %v2037 = vsel %vm1916, %v2036, %v2035
    %v2038 = vsub.s32 4, %v2014
    %v2039 = vsel %vm1916, %v2038, %v2014
    %v2040 = vsel %vm1915, %v1602, %v2037
    %v2041 = vsel %vm1915, 0, %v2039
    %v2042 = vmul.f32 %v2040, %v2040
    %v2043 = vmul.f32 %v2042, -0.001358992
    %v2044 = vadd.f32 %v2043, 0.041655596
    %v2045 = vmul.f32 %v2042, %v2044
    %v2046 = vadd.f32 %v2045, -0.4999988
    %v2047 = vmul.f32 %v2042, %v2046
    %v2048 = vadd.f32 1.0, %v2047
    %v2049 = vmul.f32 %v2040, %v2040
    %v2050 = vmul.f32 %v2049, -0.00019511016
    %v2051 = vadd.f32 %v2050, 0.008332121
    %v2052 = vmul.f32 %v2049, %v2051
    %v2053 = vadd.f32 %v2052, -0.16666654
    %v2054 = vmul.f32 %v2049, %v2053
    %v2055 = vadd.f32 %v2054, 1.0
    %v2056 = vmul.f32 %v2055, %v2040
    %vm2057 = vweird.f32 %v1602
    %v2058 = vadd.s32 %v2041, 3
    %v2059 = vand.u32 %v2058, 3
    %vm2060 = vcmp.lt.s32.totalorder %v2059, 2
    %vm2061 = vcmp.eq.s32.totalorder %v2059, 0
    %v2062 = vxor.u32 %v2056, 2147483648
    %v2063 = vsel %vm2061, %v2048, %v2062
    %vm2064 = vcmp.eq.s32.totalorder %v2059, 2
    %v2065 = vxor.u32 %v2048, 2147483648
    %v2066 = vsel %vm2064, %v2065, %v2056
    %v2067 = vsel %vm2060, %v2063, %v2066
    %v2068 = vsel %vm2057, nan, %v2067
    %v2069 = vand.u32 2147483647, %v1603
    %vm2070 = vcmp.le.f32.partialorder %v2069, 0.7853982
    %vm2071 = vcmp.lt.s32.totalorder %v1603, 0
    %v2072 = vand.u32 %v1603, 2139095040
    %v2073 = vshrl.u32 %v2072, 23
    %v2074 = vsub.s32 %v2073, 127
    %v2075 = vand.u32 2147483647, %v1603
    %v2076 = vand.u32 %v2075, 8388607
    %v2077 = vor.u32 %v2076, 8388608
    %v2078 = vsub.s32 0, %v2077
    %v2079 = vadd.s32 %v2074, 1
    %vm2080 = vcmp.gt.s32.totalorder %v2079, 0
    %v2081 = vsel %vm2080, %v2079, 0
    %v2082 = vshrl.u32 %v2081, 5
    %v2083 = vand.u32 %v2081, 31
    %v2084 = vsub.s32 32, %v2083
    %v2085 = vshrl.u32 683565275, %v2084
    %v2086 = vshll.u32 683565275, %v2083
    %v2087 = vshrl.u32 2475754826, %v2084
    %v2088 = vor.u32 %v2086, %v2087
    %v2089 = vshll.u32 2475754826, %v2083
    %v2090 = vshrl.u32 2131351028, %v2084
    %v2091 = vor.u32 %v2089, %v2090
    %v2092 = vshll.u32 2131351028, %v2083
    %v2093 = vshrl.u32 2102212464, %v2084
    %v2094 = vor.u32 %v2092, %v2093
    %v2095 = vshll.u32 2102212464, %v2083
    %v2096 = vshrl.u32 920167782, %v2084
    %v2097 = vor.u32 %v2095, %v2096
    %v2098 = vshll.u32 920167782, %v2083
    %v2099 = vshrl.u32 1326507024, %v2084
    %v2100 = vor.u32 %v2098, %v2099
    %vm2101 = vcmp.lt.s32.totalorder %v2082, 1
    %vm2102 = vcmp.lt.s32.totalorder %v2082, 2
    %vm2103 = vcmp.lt.s32.totalorder %v2082, 3
    %vm2104 = vcmp.lt.s32.totalorder %v2082, 4
    %v2105 = vsel %vm2101, %v2085, %v2088
    %v2106 = vsel %vm2104, %v2094, 2102212464
    %v2107 = vsel %vm2103, %v2091, %v2106
    %v2108 = vsel %vm2102, %v2105, %v2107
    %v2109 = vsel %vm2101, %v2088, %v2091
    %v2110 = vsel %vm2104, %v2097, 920167782
    %v2111 = vsel %vm2103, %v2094, %v2110
    %v2112 = vsel %vm2102, %v2109, %v2111
    %v2113 = vsel %vm2101, %v2091, %v2094
    %v2114 = vsel %vm2104, %v2100, 1326507024
    %v2115 = vsel %vm2103, %v2097, %v2114
    %v2116 = vsel %vm2102, %v2113, %v2115
    %v2117 = vshll.u32 %v2077, 8
    %v2118 = vand.u32 %v2117, 65535
    %v2119 = vshrl.u32 %v2117, 16
    %v2120 = vand.u32 %v2116, 65535
    %v2121 = vshrl.u32 %v2116, 16
    %v2122 = vmul.u32 %v2118, %v2120
    %v2123 = vmul.u32 %v2118, %v2121
    %v2124 = vmul.u32 %v2119, %v2120
    %v2125 = vmul.u32 %v2119, %v2121
    %v2126 = vshll.u32 %v2123, 16
    %v2127 = vshrl.u32 %v2123, 16
    %v2128 = vshll.u32 %v2124, 16
    %v2129 = vshrl.u32 %v2124, 16
    %vm2130 = vc.u32 %v2122, %v2126
    %v2131 = vsel %vm2130, 1, 0
    %v2132 = vadd.s32 %v2122, %v2126
    %v2133 = vadd.s32 %v2125, %v2131
    %vm2134 = vc.u32 %v2132, %v2128
    %v2135 = vsel %vm2134, 1, 0
    %v2136 = vadd.s32 %v2132, %v2128
    %v2137 = vadd.s32 %v2133, %v2135
    %v2138 = vadd.s32 %v2137, %v2127
    %v2139 = vadd.s32 %v2138, %v2129
    %v2140 = vand.u32 %v2117, 65535
    %v2141 = vshrl.u32 %v2117, 16
    %v2142 = vand.u32 %v2112, 65535
    %v2143 = vshrl.u32 %v2112, 16
    %v2144 = vmul.u32 %v2140, %v2142
    %v2145 = vmul.u32 %v2140, %v2143
    %v2146 = vmul.u32 %v2141, %v2142
    %v2147 = vmul.u32 %v2141, %v2143
    %v2148 = vshll.u32 %v2145, 16
    %v2149 = vshrl.u32 %v2145, 16
    %v2150 = vshll.u32 %v2146, 16
    %v2151 = vshrl.u32 %v2146, 16
    %vm2152 = vc.u32 %v2144, %v2148
    %v2153 = vsel %vm2152, 1, 0
    %v2154 = vadd.s32 %v2144, %v2148
    %v2155 = vadd.s32 %v2147, %v2153
    %vm2156 = vc.u32 %v2154, %v2150
    %v2157 = vsel %vm2156, 1, 0
    %v2158 = vadd.s32 %v2154, %v2150
    %v2159 = vadd.s32 %v2155, %v2157
    %v2160 = vadd.s32 %v2159, %v2149
    %v2161 = vadd.s32 %v2160, %v2151
    %v2162 = vmul.u32 %v2117, %v2108
    %v2163 = vadd.s32 %v2139, %v2158
    %vm2164 = vc.u32 %v2139, %v2158
    %v2165 = vadd.s32 %v2161, 1
    %v2166 = vsel %vm2164, %v2165, %v2161
    %v2167 = vadd.s32 %v2162, %v2166
    %v2168 = vadd.s32 %v2167, 536870912
    %v2169 = vshrl.u32 %v2168, 30
    %v2170 = vshll.u32 %v2169, 30
    %v2171 = vsub.s32 %v2167, %v2170
    %vm2172 = vcmp.lt.s32.totalorder %v2171, 0
    %v2173 = vsub.s32 0, %v2171
    %v2174 = vsel %vm2172, %v2173, %v2171
    %v2175 = vclz %v2174
    %v2176 = vsub.s32 %v2175, 2
    %vm2177 = vcmp.gt.s32.totalorder 0, %v2176
    %v2178 = vsel %vm2177, 0, %v2176
    %v2179 = vsub.s32 32, %v2178
    %v2180 = vshll.u32 %v2171, %v2178
    %v2181 = vshrl.u32 %v2163, %v2179
    %v2182 = vor.u32 %v2180, %v2181
    %v2183 = vsub.s32 4294967266, %v2178
    %v2184 = vadd.s32 %v2183, 127
    %v2185 = vshll.u32 %v2184, 23
    %v2186 = vor.u32 4788187, %v2185
    %v2187 = vand.u32 2147483647, %v2186
    %v2189 = vcvt.s32.f32 %v2182
    %v2190 = vmul.f32 %v2189, %v2187
    %v2191 = vxor.u32 %v2190, 2147483648
    %v2192 = vsel %vm2071, %v2191, %v2190
    %v2193 = vsub.s32 4, %v2169
    %v2194 = vsel %vm2071, %v2193, %v2169
    %v2195 = vsel %vm2070, %v1603, %v2192
    %v2196 = vsel %vm2070, 0, %v2194
    %v2197 = vmul.f32 %v2195, %v2195
    %v2198 = vmul.f32 %v2197, -0.001358992
    %v2199 = vadd.f32 %v2198, 0.041655596
    %v2200 = vmul.f32 %v2197, %v2199
    %v2201 = vadd.f32 %v2200, -0.4999988
    %v2202 = vmul.f32 %v2197, %v2201
    %v2203 = vadd.f32 1.0, %v2202
    %v2204 = vmul.f32 %v2195, %v2195
    %v2205 = vmul.f32 %v2204, -0.00019511016
    %v2206 = vadd.f32 %v2205, 0.008332121
    %v2207 = vmul.f32 %v2204, %v2206
    %v2208 = vadd.f32 %v2207, -0.16666654
    %v2209 = vmul.f32 %v2204, %v2208
    %v2210 = vadd.f32 %v2209, 1.0
    %v2211 = vmul.f32 %v2210, %v2195
    %vm2212 = vweird.f32 %v1603
    %v2213 = vadd.s32 %v2196, 3
    %v2214 = vand.u32 %v2213, 3
    %vm2215 = vcmp.lt.s32.totalorder %v2214, 2
    %vm2216 = vcmp.eq.s32.totalorder %v2214, 0
    %v2217 = vxor.u32 %v2211, 2147483648
    %v2218 = vsel %vm2216, %v2203, %v2217
    %vm2219 = vcmp.eq.s32.totalorder %v2214, 2
    %v2220 = vxor.u32 %v2203, 2147483648
    %v2221 = vsel %vm2219, %v2220, %v2211
    %v2222 = vsel %vm2215, %v2218, %v2221
    %v2223 = vsel %vm2212, nan, %v2222
    %v2224 = vld [vmem:[%s4] sm:$0xff]
    %v2225 = vld [vmem:[%s4 + $0x8] sm:$0xff]
    %v2226 = vld [vmem:[%s4 + $0x10] sm:$0xff]
    %v2227 = vld [vmem:[%s4 + $0x18] sm:$0xff]
    %v2228 = vld [vmem:[%s4 + $0x20] sm:$0xff]
    %v2229 = vld [vmem:[%s4 + $0x28] sm:$0xff]
    %v2230 = vld [vmem:[%s4 + $0x30] sm:$0xff]
    %v2231 = vld [vmem:[%s4 + $0x38] sm:$0xff]
    %v2232 = vld [vmem:[%s4 + $0x40] sm:$0xff]
    %v2233 = vld [vmem:[%s4 + $0x48] sm:$0xff]
    %v2234 = vld [vmem:[%s4 + $0x50] sm:$0xff]
    %v2235 = vld [vmem:[%s4 + $0x58] sm:$0xff]
    %v2236 = vld [vmem:[%s4 + $0x60] sm:$0xff]
    %v2237 = vld [vmem:[%s4 + $0x68] sm:$0xff]
    %v2238 = vld [vmem:[%s4 + $0x70] sm:$0xff]
    %v2239 = vld [vmem:[%s4 + $0x78] sm:$0xff]
    %v2240 = vld [vmem:[%s4 + $0x80] sm:$0xff]
    %v2241 = vld [vmem:[%s4 + $0x88] sm:$0xff]
    %v2242 = vld [vmem:[%s4 + $0x90] sm:$0xff]
    %v2243 = vld [vmem:[%s4 + $0x98] sm:$0xff]
    %v2244 = vld [vmem:[%s4 + $0xa0] sm:$0xff]
    %v2245 = vld [vmem:[%s4 + $0xa8] sm:$0xff]
    %v2246 = vld [vmem:[%s4 + $0xb0] sm:$0xff]
    %v2247 = vld [vmem:[%s4 + $0xb8] sm:$0xff]
    %v2248 = vld [vmem:[%s4 + $0xc0] sm:$0xff]
    %v2249 = vld [vmem:[%s4 + $0xc8] sm:$0xff]
    %v2250 = vld [vmem:[%s4 + $0xd0] sm:$0xff]
    %v2251 = vld [vmem:[%s4 + $0xd8] sm:$0xff]
    %v2252 = vld [vmem:[%s4 + $0xe0] sm:$0xff]
    %v2253 = vld [vmem:[%s4 + $0xe8] sm:$0xff]
    %v2254 = vld [vmem:[%s4 + $0xf0] sm:$0xff]
    %v2255 = vld [vmem:[%s4 + $0xf8] sm:$0xff]
    %v2256 = vld [vmem:[%s5] sm:$0x1]
    %v2258 = vperm.slane %v2256, 0
    %2260 = vmatpush.msra.mxu0 %v2239
    %2261 = vmatpush.msra.mxu0 %v2238
    %2262 = vmatpush.msra.mxu0 %v2237
    %2263 = vmatpush.msra.mxu0 %v2236
    %2264 = vmatpush.msra.mxu0 %v2235
    %2265 = vmatpush.msra.mxu0 %v2234
    %2266 = vmatpush.msra.mxu0 %v2233
    %2267 = vmatpush.msra.mxu0 %v2232
    %2268 = vmatpush.msra.mxu0 %v2231
    %2269 = vmatpush.msra.mxu0 %v2230
    %2270 = vmatpush.msra.mxu0 %v2229
    %2271 = vmatpush.msra.mxu0 %v2228
    %2272 = vmatpush.msra.mxu0 %v2227
    %2273 = vmatpush.msra.mxu0 %v2226
    %2274 = vmatpush.msra.mxu0 %v2225
    %2275 = vmatpush.msra.mxu0 %v2224
    %2276 = vmatmul.f32.gmra.mxu0 %v1758
    %v2277 = vpop.f32.mrf.mxu0
    %v2278 = vadd.f32 %v2258, %v2277
    %2279 = vmatmul.f32.gmra.mxu0 %v2068
    %v2280 = vpop.f32.mrf.mxu0
    %v2281 = vadd.f32 %v2258, %v2280
    %2282 = vdwg.mxu0
    %2283 = vmatpush.msra.mxu0 %v2255
    %2284 = vmatpush.msra.mxu0 %v2254
    %2285 = vmatpush.msra.mxu0 %v2253
    %2286 = vmatpush.msra.mxu0 %v2252
    %2287 = vmatpush.msra.mxu0 %v2251
    %2288 = vmatpush.msra.mxu0 %v2250
    %2289 = vmatpush.msra.mxu0 %v2249
    %2290 = vmatpush.msra.mxu0 %v2248
    %2291 = vmatpush.msra.mxu0 %v2247
    %2292 = vmatpush.msra.mxu0 %v2246
    %2293 = vmatpush.msra.mxu0 %v2245
    %2294 = vmatpush.msra.mxu0 %v2244
    %2295 = vmatpush.msra.mxu0 %v2243
    %2296 = vmatpush.msra.mxu0 %v2242
    %2297 = vmatpush.msra.mxu0 %v2241
    %2298 = vmatpush.msra.mxu0 %v2240
    %2299 = vmatmul.f32.gmra.mxu0 %v1913
    %v2300 = vpop.f32.mrf.mxu0
    %v2301 = vadd.f32 %v2278, %v2300
    %2302 = vmatmul.f32.gmra.mxu0 %v2223
    %v2303 = vpop.f32.mrf.mxu0
    %v2304 = vadd.f32 %v2281, %v2303
    %2305 = vdwg.mxu0
    %2306 = vst [vmem:[#allocation2] sm:$0xff] %v2301
    %2307 = vst [vmem:[#allocation2 + $0x8] sm:$0xff] %v2304
    // Predicated region
    $region26: #{grid_neural_network_3d.1} parent=1 // pred_check
      _
    $region27: #{grid_neural_network_3d.1} parent=1 // pred_check_branch
      %2309 = sbr.rel (0) target = $region29
    $region28: #{grid_neural_network_3d.1} parent=1 // pred_region
      %2311 = vsyncadd [#allocation3], 0
      %s2312 = sshll.u32 [#allocation2], 4
      %s2313 = int_to_ptr.vmem [resolvable:$true] %s2312
      %s2314 = sshll.u32 %s6, 4
      %s2315 = int_to_ptr.hbm [resolvable:$true] %s2314
      %2320 = dma.vmem_to_hbm [thread:$0]  %s2313, 256, %s2315, [#allocation3], 128, 128, 8
    $region29: #{grid_neural_network_3d.1} parent=1 // pred_fallthru
      _
    // Predicated region
    $region30: #{grid_neural_network_3d.1} parent=1 // pred_check
      _
    $region31: #{grid_neural_network_3d.1} parent=1 // pred_check_branch
      %2322 = sbr.rel (0) target = $region33
    $region32: #{grid_neural_network_3d.1} parent=1 // pred_region
      %2324 = dma.done [#allocation3], 256
    $region33: #{grid_neural_network_3d.1} parent=1 // pred_fallthru
      _
    %2325 = vsyncpa [#allocation3], 1

</llo_original>
